<compile_context>
chip_gen: v7x
topology: tpu7x:2x2x1
jax: 0.10.0
libtpu: 0.0.40
codegen_flags: <defaults>
</compile_context>

<pallas_src>
import math

import jax
import jax.numpy as jnp
from jax import lax
from jax.experimental import pallas as pl
from jax.experimental.pallas import tpu as pltpu


def _vmem_capacity_bytes():
    """Physical per-core VMEM; conservative 64 MiB fallback (v7x)."""
    try:
        info = pltpu.get_tpu_info()
        cap = int(getattr(info, "vmem_capacity_bytes", 0))
        if cap > 0:
            return cap
    except Exception:
        pass
    return 64 << 20


def _make_mha_kernel(num_heads, head_dim, n_valid, n_pad, tile_n, scratch_dtype):
    d_model = num_heads * head_dim
    del d_model  # (documentation only)

    def kernel(q_ref, k_ref, v_ref,
               wq_ref, wk_ref, wv_ref, wm_ref,
               bq_ref, bk_ref, bv_ref, bm_ref,
               o_ref,
               q_s, k_s, v_s, res_s):
        # ---- K/V projections: only once per batch element (query tile t == 0).
        #      The t grid axis is "arbitrary", so k_s/v_s persist across t.  ----
        @pl.when(pl.program_id(1) == 0)
        def _():
            k_in = k_ref[0]                                     # (D, n_pad)  bf16
            v_in = v_ref[0]
            k_s[...] = (jnp.dot(wk_ref[...], k_in, preferred_element_type=jnp.float32)
                        + bk_ref[...]).astype(scratch_dtype)
            v_s[...] = (jnp.dot(wv_ref[...], v_in, preferred_element_type=jnp.float32)
                        + bv_ref[...]).astype(scratch_dtype)

        # ---- Q projection every query tile (1/sqrt(dim) pre-folded into wq/bq). ----
        q_in = q_ref[0]                                         # (D, tile_n) bf16
        q_s[...] = (jnp.dot(wq_ref[...], q_in, preferred_element_type=jnp.float32)
                    + bq_ref[...]).astype(scratch_dtype)

        # Mask for padded key positions (no softmax mass).  Hoisted out of the
        # unrolled head loop (JAX does not CSE broadcast_in_dim).
        if n_pad != n_valid:
            key_mask = lax.broadcasted_iota(jnp.int32, (tile_n, n_pad), 1) < n_valid
        else:
            key_mask = None

        # ---- per-head attention, fully unrolled: head h+1's scores matmul can
        #      issue while head h's softmax runs on VPU/EUP/XLU. ----
        for h in range(num_heads):
            lo = h * head_dim
            qh = q_s[lo:lo + head_dim, :]                       # (dim, tile_n)
            kh = k_s[lo:lo + head_dim, :]                       # (dim, n_pad)
            vh = v_s[lo:lo + head_dim, :]                       # (dim, n_pad)

            # scores[n, m] = sum_d qh[d, n] * kh[d, m]   (scale pre-folded into wq/bq)
            scores = lax.dot_general(qh, kh, (((0,), (0,)), ((), ())),
                                     preferred_element_type=jnp.float32)
            if key_mask is not None:
                scores = jnp.where(key_mask, scores, -1e30)

            # softmax over keys, f32 stats
            scores = scores - jnp.max(scores, axis=-1, keepdims=True)
            e = jnp.exp(scores)
            denom = jnp.sum(e, axis=-1, keepdims=True)
            prob = (e * pl.reciprocal(denom, approx=True)).astype(scratch_dtype)

            # res[d, n] = sum_m prob[n, m] * vh[d, m]
            res_s[lo:lo + head_dim, :] = lax.dot_general(
                vh, prob, (((1,), (1,)), ((), ())),
                preferred_element_type=jnp.float32).astype(scratch_dtype)

        # ---- merge conv: one (D,D)@(D,tile_n) matmul + bias (no reshapes). ----
        out = (jnp.dot(wm_ref[...], res_s[...], preferred_element_type=jnp.float32)
               + bm_ref[...])
        o_ref[0] = out.astype(o_ref.dtype)

    return kernel


def multi_headed_attention(query, key, value, params, num_heads):
    """Pallas implementation of MultiHeadedAttention.forward.

    query/key/value: (B, d_model, N) float32 (NCL layout, as Conv1d consumes).
    params: 'wq','bq','wk','bk','wv','bv' (proj convs) and 'wm','bm' (merge);
            weights (d_model, d_model), biases (d_model,).
    Note: bf16 MXU operands + approx-reciprocal softmax -> not bit-identical to
    an f32 softmax reference.
    """
    B, D, N = query.shape
    assert D % num_heads == 0
    dim = D // num_heads
    H = num_heads
    out_dtype = query.dtype
    scale = 1.0 / math.sqrt(float(dim))

    cap = _vmem_capacity_bytes()
    big_vmem = cap >= (100 << 20)          # v5e / v6e (128 MiB); v7x has 64 MiB

    # Lane-dense sequence padding and query-tile size (per generation).
    n_pad = max(128, ((N + 127) // 128) * 128)
    if big_vmem and n_pad >= 1024 and n_pad % 512 == 0:
        tile_n = 512
    elif n_pad >= 512 and n_pad % 256 == 0:
        tile_n = 256
    else:
        tile_n = 128
    num_q_tiles = n_pad // tile_n
    # TODO(synk): for very large N on v7x (64 MiB VMEM), add a key-dimension
    # tile with flash-style online softmax instead of the full (tile_n, n_pad)
    # score block.

    # Scratch dtype: bf16 whenever per-head row slices stay aligned to the
    # bf16 (16,128) tile; fall back to f32 otherwise (e.g. head_dim == 8).
    if dim % 16 == 0:
        scratch_dtype = jnp.bfloat16
    else:
        scratch_dtype = jnp.float32
        # TODO(synk): head_dim not a multiple of 8 would need a 3-D scratch path.

    def pad_cast(x):
        if n_pad != N:
            x = jnp.pad(x, ((0, 0), (0, 0), (0, n_pad - N)))
        return x.astype(jnp.bfloat16)

    qp, kp, vp = pad_cast(query), pad_cast(key), pad_cast(value)

    # Head-contiguous permutation of projection weights/biases:
    # projected channel c = d*H + h  ->  stacked row h*dim + d.
    def perm_proj(W, b, s=1.0):
        Wp = W.reshape(dim, H, D).transpose(1, 0, 2).reshape(D, D) * s
        bp = b.reshape(dim, H).T.reshape(D, 1) * s
        return Wp.astype(jnp.bfloat16), bp.astype(jnp.float32)

    # 1/sqrt(dim) folded into the query projection (in f32, before bf16 cast).
    wq, bq = perm_proj(params['wq'], params['bq'], scale)
    wk, bk = perm_proj(params['wk'], params['bk'])
    wv, bv = perm_proj(params['wv'], params['bv'])
    # Merge conv: permute COLUMNS to match the head-contiguous result layout.
    wm = params['wm'].reshape(D, dim, H).transpose(0, 2, 1).reshape(D, D).astype(jnp.bfloat16)
    bm = params['bm'].reshape(D, 1).astype(jnp.float32)

    kernel = _make_mha_kernel(H, dim, N, n_pad, tile_n, scratch_dtype)

    # VMEM budget: double-buffered q/out tiles + resident k/v tiles + weights,
    # projection scratch, and a few live (tile_n, n_pad) f32 softmax blocks.
    b16, b32 = 2, 4
    sb = 2 if scratch_dtype == jnp.bfloat16 else 4
    vmem_est = (
        4 * D * D * b16 * 2 + 4 * D * b32 * 2          # weights + biases (x2 buffers)
        + 2 * D * tile_n * b16                         # query input tile  (x2, bf16)
        + 2 * D * tile_n * b32                         # output tile       (x2, f32)
        + 2 * 2 * D * n_pad * b16                      # key / value tiles (x2, bf16)
        + (2 * D * tile_n + 2 * D * n_pad) * sb        # q/res + k/v scratch
        + 3 * tile_n * n_pad * b32                     # live scores / exp / prob
    )
    vmem_limit = max(int(vmem_est * 1.4) + (2 << 20), 32 << 20)
    vmem_limit = min(vmem_limit, (cap * 3) // 4)       # never exceed physical VMEM

    full2 = lambda b, t: (0, 0)

    out = pl.pallas_call(
        kernel,
        out_shape=jax.ShapeDtypeStruct((B, D, n_pad), out_dtype),
        grid_spec=pltpu.PrefetchScalarGridSpec(
            num_scalar_prefetch=0,
            grid=(B, num_q_tiles),
            in_specs=[
                pl.BlockSpec((1, D, tile_n), lambda b, t: (b, 0, t)),   # query tile
                pl.BlockSpec((1, D, n_pad), lambda b, t: (b, 0, 0)),    # key (resident per batch)
                pl.BlockSpec((1, D, n_pad), lambda b, t: (b, 0, 0)),    # value
                pl.BlockSpec((D, D), full2),   # wq (head-stacked, pre-scaled)
                pl.BlockSpec((D, D), full2),   # wk
                pl.BlockSpec((D, D), full2),   # wv
                pl.BlockSpec((D, D), full2),   # wm (column-permuted merge)
                pl.BlockSpec((D, 1), full2),   # bq
                pl.BlockSpec((D, 1), full2),   # bk
                pl.BlockSpec((D, 1), full2),   # bv
                pl.BlockSpec((D, 1), full2),   # bm
            ],
            out_specs=pl.BlockSpec((1, D, tile_n), lambda b, t: (b, 0, t)),
            scratch_shapes=[
                pltpu.VMEM((D, tile_n), scratch_dtype),   # projected q (per tile)
                pltpu.VMEM((D, n_pad), scratch_dtype),    # projected k (per batch elem)
                pltpu.VMEM((D, n_pad), scratch_dtype),    # projected v (per batch elem)
                pltpu.VMEM((D, tile_n), scratch_dtype),   # per-head attention results
            ],
        ),
        compiler_params=pltpu.CompilerParams(
            # Query-tile axis MUST be "arbitrary": K/V projection is gated on
            # t == 0 and its scratch persists across t within a batch element.
            dimension_semantics=("parallel", "arbitrary"),
            vmem_limit_bytes=vmem_limit,
        ),
    )(qp, kp, vp, wq, wk, wv, wm, bq, bk, bv, bm)

    return out[:, :, :N]


def reference_forward(query, key, value, params, num_heads):
    """Pure-JAX f32 transcription of the PyTorch forward (for verification)."""
    B, D, N = query.shape
    dim = D // num_heads

    def conv1x1(x, W, b):
        return jnp.einsum('oi,bin->bon', W, x) + b[None, :, None]

    qp = conv1x1(query, params['wq'], params['bq']).reshape(B, dim, num_heads, N)
    kp = conv1x1(key,   params['wk'], params['bk']).reshape(B, dim, num_heads, N)
    vp = conv1x1(value, params['wv'], params['bv']).reshape(B, dim, num_heads, N)

    scores = jnp.einsum('bdhn,bdhm->bhnm', qp, kp) / math.sqrt(float(dim))
    prob = jax.nn.softmax(scores, axis=-1)
    res = jnp.einsum('bhnm,bdhm->bdhn', prob, vp)
    x = res.reshape(B, D, N)
    return conv1x1(x, params['wm'], params['bm'])


if __name__ == "__main__":
    # Small deterministic example: d_model=32, num_heads=4 (dim=8), B=2, N=16.
    B, d_model, num_heads, N = 2, 32, 4, 16

    key0 = jax.random.PRNGKey(0)
    keys = jax.random.split(key0, 16)

    def w(k):  # Conv1d weight (out, in), kernel_size=1 squeezed
        return 0.1 * jax.random.normal(k, (d_model, d_model), jnp.float32)

    def bvec(k):
        return 0.1 * jax.random.normal(k, (d_model,), jnp.float32)

    params = {
        'wq': w(keys[0]), 'bq': bvec(keys[1]),
        'wk': w(keys[2]), 'bk': bvec(keys[3]),
        'wv': w(keys[4]), 'bv': bvec(keys[5]),
        'wm': w(keys[6]), 'bm': bvec(keys[7]),
    }

    query = jax.random.normal(keys[8],  (B, d_model, N), jnp.float32)
    key_  = jax.random.normal(keys[9],  (B, d_model, N), jnp.float32)
    value = jax.random.normal(keys[10], (B, d_model, N), jnp.float32)

    out = multi_headed_attention(query, key_, value, params, num_heads)
    out = jax.block_until_ready(out)

    ref = reference_forward(query, key_, value, params, num_heads)
    assert out.shape == (B, d_model, N)
    # bf16 MXU operands + approx reciprocal -> loosen tolerance vs f32 reference.
    max_err = jnp.max(jnp.abs(out - ref))
    assert jnp.allclose(out, ref, atol=5e-2, rtol=5e-2), f"max abs err = {max_err}"

    print("KERNEL_OK")
</pallas_src>

<mosaic_0001>
module attributes {stable_mosaic.version = 11 : i64} {
  func.func @kernel(%arg0: i32, %arg1: i32, %arg2: memref<1x32x128xbf16, #tpu.memory_space<vmem>>, %arg3: memref<1x32x128xbf16, #tpu.memory_space<vmem>>, %arg4: memref<1x32x128xbf16, #tpu.memory_space<vmem>>, %arg5: memref<32x32xbf16, #tpu.memory_space<vmem>>, %arg6: memref<32x32xbf16, #tpu.memory_space<vmem>>, %arg7: memref<32x32xbf16, #tpu.memory_space<vmem>>, %arg8: memref<32x32xbf16, #tpu.memory_space<vmem>>, %arg9: memref<32x1xf32, #tpu.memory_space<vmem>>, %arg10: memref<32x1xf32, #tpu.memory_space<vmem>>, %arg11: memref<32x1xf32, #tpu.memory_space<vmem>>, %arg12: memref<32x1xf32, #tpu.memory_space<vmem>>, %arg13: memref<1x32x128xf32, #tpu.memory_space<vmem>>, %arg14: memref<32x128xf32, #tpu.memory_space<vmem>>, %arg15: memref<32x128xf32, #tpu.memory_space<vmem>>, %arg16: memref<32x128xf32, #tpu.memory_space<vmem>>, %arg17: memref<32x128xf32, #tpu.memory_space<vmem>>) attributes {dimension_semantics = [#tpu.dimension_semantics<parallel>, #tpu.dimension_semantics<arbitrary>], iteration_bounds = array<i64: 2, 1>, scalar_prefetch = 0 : i64, scratch_operands = 4 : i64, tpu.core_type = #tpu.core_type<tc>, window_params = [{transform_indices = @transform_0, window_bounds = array<i64: 1, 32, 128>}, {transform_indices = @transform_1, window_bounds = array<i64: 1, 32, 128>}, {transform_indices = @transform_2, window_bounds = array<i64: 1, 32, 128>}, {pipeline_mode = #tpu.pipeline_mode<synchronous>, transform_indices = @transform_3, window_bounds = array<i64: 32, 32>}, {pipeline_mode = #tpu.pipeline_mode<synchronous>, transform_indices = @transform_4, window_bounds = array<i64: 32, 32>}, {pipeline_mode = #tpu.pipeline_mode<synchronous>, transform_indices = @transform_5, window_bounds = array<i64: 32, 32>}, {pipeline_mode = #tpu.pipeline_mode<synchronous>, transform_indices = @transform_6, window_bounds = array<i64: 32, 32>}, {pipeline_mode = #tpu.pipeline_mode<synchronous>, transform_indices = @transform_7, window_bounds = array<i64: 32, 1>}, {pipeline_mode = #tpu.pipeline_mode<synchronous>, transform_indices = @transform_8, window_bounds = array<i64: 32, 1>}, {pipeline_mode = #tpu.pipeline_mode<synchronous>, transform_indices = @transform_9, window_bounds = array<i64: 32, 1>}, {pipeline_mode = #tpu.pipeline_mode<synchronous>, transform_indices = @transform_10, window_bounds = array<i64: 32, 1>}, {transform_indices = @transform_11, window_bounds = array<i64: 1, 32, 128>}]} {
    %c0_i32 = arith.constant 0 : i32
    %0 = arith.cmpi eq, %arg1, %c0_i32 : i32
    %1 = arith.extui %0 : i1 to i32
    %c0_i32_0 = arith.constant 0 : i32
    %2 = arith.cmpi ne, %1, %c0_i32_0 : i32
    scf.if %2 {
      %c0_68 = arith.constant 0 : index
      %c0_69 = arith.constant 0 : index
      %c0_70 = arith.constant 0 : index
      %95 = vector.load %arg3[%c0_68, %c0_69, %c0_70] : memref<1x32x128xbf16, #tpu.memory_space<vmem>>, vector<1x32x128xbf16>
      %96 = vector.shape_cast %95 : vector<1x32x128xbf16> to vector<32x128xbf16>
      %c0_71 = arith.constant 0 : index
      %c0_72 = arith.constant 0 : index
      %c0_73 = arith.constant 0 : index
      %97 = vector.load %arg4[%c0_71, %c0_72, %c0_73] : memref<1x32x128xbf16, #tpu.memory_space<vmem>>, vector<1x32x128xbf16>
      %98 = vector.shape_cast %97 : vector<1x32x128xbf16> to vector<32x128xbf16>
      %c0_74 = arith.constant 0 : index
      %c0_75 = arith.constant 0 : index
      %99 = vector.load %arg6[%c0_74, %c0_75] : memref<32x32xbf16, #tpu.memory_space<vmem>>, vector<32x32xbf16>
      %cst_76 = arith.constant dense<0.000000e+00> : vector<32x128xf32>
      %100 = tpu.matmul %99, %96, %cst_76 {dimension_numbers = #tpu.dot_dimension_numbers<[1], [0], [0], [1], [0, 0, 1, 1], [], []>} : vector<32x32xbf16>, vector<32x128xbf16>, vector<32x128xf32> -> vector<32x128xf32>
      %c0_77 = arith.constant 0 : index
      %c0_78 = arith.constant 0 : index
      %101 = vector.load %arg10[%c0_77, %c0_78] : memref<32x1xf32, #tpu.memory_space<vmem>>, vector<32x1xf32>
      %102 = vector.broadcast %101 : vector<32x1xf32> to vector<32x128xf32>
      %103 = arith.addf %100, %102 : vector<32x128xf32>
      %c0_79 = arith.constant 0 : index
      %c0_80 = arith.constant 0 : index
      %104 = vector.load %arg15[%c0_79, %c0_80] : memref<32x128xf32, #tpu.memory_space<vmem>>, vector<32x128xf32>
      tpu.vector_store %arg15[%c0_79, %c0_80], %103 {strides = array<i32>} : memref<32x128xf32, #tpu.memory_space<vmem>>, vector<32x128xf32>,
      %c0_81 = arith.constant 0 : index
      %c0_82 = arith.constant 0 : index
      %105 = vector.load %arg7[%c0_81, %c0_82] : memref<32x32xbf16, #tpu.memory_space<vmem>>, vector<32x32xbf16>
      %cst_83 = arith.constant dense<0.000000e+00> : vector<32x128xf32>
      %106 = tpu.matmul %105, %98, %cst_83 {dimension_numbers = #tpu.dot_dimension_numbers<[1], [0], [0], [1], [0, 0, 1, 1], [], []>} : vector<32x32xbf16>, vector<32x128xbf16>, vector<32x128xf32> -> vector<32x128xf32>
      %c0_84 = arith.constant 0 : index
      %c0_85 = arith.constant 0 : index
      %107 = vector.load %arg11[%c0_84, %c0_85] : memref<32x1xf32, #tpu.memory_space<vmem>>, vector<32x1xf32>
      %108 = vector.broadcast %107 : vector<32x1xf32> to vector<32x128xf32>
      %109 = arith.addf %106, %108 : vector<32x128xf32>
      %c0_86 = arith.constant 0 : index
      %c0_87 = arith.constant 0 : index
      %110 = vector.load %arg16[%c0_86, %c0_87] : memref<32x128xf32, #tpu.memory_space<vmem>>, vector<32x128xf32>
      tpu.vector_store %arg16[%c0_86, %c0_87], %109 {strides = array<i32>} : memref<32x128xf32, #tpu.memory_space<vmem>>, vector<32x128xf32>,
    } else {
    }
    %c0 = arith.constant 0 : index
    %c0_1 = arith.constant 0 : index
    %c0_2 = arith.constant 0 : index
    %3 = vector.load %arg2[%c0, %c0_1, %c0_2] : memref<1x32x128xbf16, #tpu.memory_space<vmem>>, vector<1x32x128xbf16>
    %4 = vector.shape_cast %3 : vector<1x32x128xbf16> to vector<32x128xbf16>
    %c0_3 = arith.constant 0 : index
    %c0_4 = arith.constant 0 : index
    %5 = vector.load %arg5[%c0_3, %c0_4] : memref<32x32xbf16, #tpu.memory_space<vmem>>, vector<32x32xbf16>
    %cst = arith.constant dense<0.000000e+00> : vector<32x128xf32>
    %6 = tpu.matmul %5, %4, %cst {dimension_numbers = #tpu.dot_dimension_numbers<[1], [0], [0], [1], [0, 0, 1, 1], [], []>} : vector<32x32xbf16>, vector<32x128xbf16>, vector<32x128xf32> -> vector<32x128xf32>
    %c0_5 = arith.constant 0 : index
    %c0_6 = arith.constant 0 : index
    %7 = vector.load %arg9[%c0_5, %c0_6] : memref<32x1xf32, #tpu.memory_space<vmem>>, vector<32x1xf32>
    %8 = vector.broadcast %7 : vector<32x1xf32> to vector<32x128xf32>
    %9 = arith.addf %6, %8 : vector<32x128xf32>
    %c0_7 = arith.constant 0 : index
    %c0_8 = arith.constant 0 : index
    %10 = vector.load %arg14[%c0_7, %c0_8] : memref<32x128xf32, #tpu.memory_space<vmem>>, vector<32x128xf32>
    tpu.vector_store %arg14[%c0_7, %c0_8], %9 {strides = array<i32>} : memref<32x128xf32, #tpu.memory_space<vmem>>, vector<32x128xf32>,
    %11 = tpu.iota {dimensions = array<i32: 1>} : vector<128x128xi32>
    %c16_i32 = arith.constant 16 : i32
    %12 = vector.broadcast %c16_i32 : i32 to vector<128x128xi32>
    %13 = arith.cmpi slt, %11, %12 : vector<128x128xi32>
    %c0_9 = arith.constant 0 : index
    %c0_10 = arith.constant 0 : index
    %14 = vector.load %arg14[%c0_9, %c0_10] : memref<32x128xf32, #tpu.memory_space<vmem>>, vector<8x128xf32>
    %c0_11 = arith.constant 0 : index
    %c0_12 = arith.constant 0 : index
    %15 = vector.load %arg15[%c0_11, %c0_12] : memref<32x128xf32, #tpu.memory_space<vmem>>, vector<8x128xf32>
    %c0_13 = arith.constant 0 : index
    %c0_14 = arith.constant 0 : index
    %16 = vector.load %arg16[%c0_13, %c0_14] : memref<32x128xf32, #tpu.memory_space<vmem>>, vector<8x128xf32>
    %cst_15 = arith.constant dense<0.000000e+00> : vector<128x128xf32>
    %17 = tpu.matmul %14, %15, %cst_15 {dimension_numbers = #tpu.dot_dimension_numbers<[0], [0], [1], [1], [0, 1, 1, 1], [], []>} : vector<8x128xf32>, vector<8x128xf32>, vector<128x128xf32> -> vector<128x128xf32>
    %cst_16 = arith.constant -1.000000e+30 : f32
    %18 = vector.broadcast %cst_16 : f32 to vector<128x128xf32>
    %19 = arith.select %13, %17, %18 : vector<128x128xi1>, vector<128x128xf32>
    %cst_17 = arith.constant dense<0xFF800000> : vector<128xf32>
    %20 = vector.multi_reduction <maximumf>, %19, %cst_17 [1] : vector<128x128xf32> to vector<128xf32>
    %21 = vector.shape_cast %20 : vector<128xf32> to vector<128x1xf32>
    %22 = vector.broadcast %21 : vector<128x1xf32> to vector<128x128xf32>
    %23 = arith.subf %19, %22 : vector<128x128xf32>
    %24 = math.exp %23 : vector<128x128xf32>
    %cst_18 = arith.constant dense<0.000000e+00> : vector<128xf32>
    %25 = vector.multi_reduction <add>, %24, %cst_18 [1] : vector<128x128xf32> to vector<128xf32>
    %26 = vector.shape_cast %25 : vector<128xf32> to vector<128x1xf32>
    %27 = tpu.reciprocal %26 {approx = true} : vector<128x1xf32> -> vector<128x1xf32>
    %28 = vector.broadcast %27 : vector<128x1xf32> to vector<128x128xf32>
    %29 = arith.mulf %24, %28 : vector<128x128xf32>
    %cst_19 = arith.constant dense<0.000000e+00> : vector<8x128xf32>
    %30 = tpu.matmul %16, %29, %cst_19 {dimension_numbers = #tpu.dot_dimension_numbers<[1], [1], [0], [0], [0, 0, 1, 0], [], []>} : vector<8x128xf32>, vector<128x128xf32>, vector<8x128xf32> -> vector<8x128xf32>
    %c0_20 = arith.constant 0 : index
    %c0_21 = arith.constant 0 : index
    %31 = vector.load %arg17[%c0_20, %c0_21] : memref<32x128xf32, #tpu.memory_space<vmem>>, vector<8x128xf32>
    tpu.vector_store %arg17[%c0_20, %c0_21], %30 {strides = array<i32>} : memref<32x128xf32, #tpu.memory_space<vmem>>, vector<8x128xf32>,
    %c8 = arith.constant 8 : index
    %c0_22 = arith.constant 0 : index
    %32 = vector.load %arg14[%c8, %c0_22] : memref<32x128xf32, #tpu.memory_space<vmem>>, vector<8x128xf32>
    %c8_23 = arith.constant 8 : index
    %c0_24 = arith.constant 0 : index
    %33 = vector.load %arg15[%c8_23, %c0_24] : memref<32x128xf32, #tpu.memory_space<vmem>>, vector<8x128xf32>
    %c8_25 = arith.constant 8 : index
    %c0_26 = arith.constant 0 : index
    %34 = vector.load %arg16[%c8_25, %c0_26] : memref<32x128xf32, #tpu.memory_space<vmem>>, vector<8x128xf32>
    %cst_27 = arith.constant dense<0.000000e+00> : vector<128x128xf32>
    %35 = tpu.matmul %32, %33, %cst_27 {dimension_numbers = #tpu.dot_dimension_numbers<[0], [0], [1], [1], [0, 1, 1, 1], [], []>} : vector<8x128xf32>, vector<8x128xf32>, vector<128x128xf32> -> vector<128x128xf32>
    %cst_28 = arith.constant -1.000000e+30 : f32
    %36 = vector.broadcast %cst_28 : f32 to vector<128x128xf32>
    %37 = arith.select %13, %35, %36 : vector<128x128xi1>, vector<128x128xf32>
    %cst_29 = arith.constant dense<0xFF800000> : vector<128xf32>
    %38 = vector.multi_reduction <maximumf>, %37, %cst_29 [1] : vector<128x128xf32> to vector<128xf32>
    %39 = vector.shape_cast %38 : vector<128xf32> to vector<128x1xf32>
    %40 = vector.broadcast %39 : vector<128x1xf32> to vector<128x128xf32>
    %41 = arith.subf %37, %40 : vector<128x128xf32>
    %42 = math.exp %41 : vector<128x128xf32>
    %cst_30 = arith.constant dense<0.000000e+00> : vector<128xf32>
    %43 = vector.multi_reduction <add>, %42, %cst_30 [1] : vector<128x128xf32> to vector<128xf32>
    %44 = vector.shape_cast %43 : vector<128xf32> to vector<128x1xf32>
    %45 = tpu.reciprocal %44 {approx = true} : vector<128x1xf32> -> vector<128x1xf32>
    %46 = vector.broadcast %45 : vector<128x1xf32> to vector<128x128xf32>
    %47 = arith.mulf %42, %46 : vector<128x128xf32>
    %cst_31 = arith.constant dense<0.000000e+00> : vector<8x128xf32>
    %48 = tpu.matmul %34, %47, %cst_31 {dimension_numbers = #tpu.dot_dimension_numbers<[1], [1], [0], [0], [0, 0, 1, 0], [], []>} : vector<8x128xf32>, vector<128x128xf32>, vector<8x128xf32> -> vector<8x128xf32>
    %c8_32 = arith.constant 8 : index
    %c0_33 = arith.constant 0 : index
    %49 = vector.load %arg17[%c8_32, %c0_33] : memref<32x128xf32, #tpu.memory_space<vmem>>, vector<8x128xf32>
    tpu.vector_store %arg17[%c8_32, %c0_33], %48 {strides = array<i32>} : memref<32x128xf32, #tpu.memory_space<vmem>>, vector<8x128xf32>,
    %c16 = arith.constant 16 : index
    %c0_34 = arith.constant 0 : index
    %50 = vector.load %arg14[%c16, %c0_34] : memref<32x128xf32, #tpu.memory_space<vmem>>, vector<8x128xf32>
    %c16_35 = arith.constant 16 : index
    %c0_36 = arith.constant 0 : index
    %51 = vector.load %arg15[%c16_35, %c0_36] : memref<32x128xf32, #tpu.memory_space<vmem>>, vector<8x128xf32>
    %c16_37 = arith.constant 16 : index
    %c0_38 = arith.constant 0 : index
    %52 = vector.load %arg16[%c16_37, %c0_38] : memref<32x128xf32, #tpu.memory_space<vmem>>, vector<8x128xf32>
    %cst_39 = arith.constant dense<0.000000e+00> : vector<128x128xf32>
    %53 = tpu.matmul %50, %51, %cst_39 {dimension_numbers = #tpu.dot_dimension_numbers<[0], [0], [1], [1], [0, 1, 1, 1], [], []>} : vector<8x128xf32>, vector<8x128xf32>, vector<128x128xf32> -> vector<128x128xf32>
    %cst_40 = arith.constant -1.000000e+30 : f32
    %54 = vector.broadcast %cst_40 : f32 to vector<128x128xf32>
    %55 = arith.select %13, %53, %54 : vector<128x128xi1>, vector<128x128xf32>
    %cst_41 = arith.constant dense<0xFF800000> : vector<128xf32>
    %56 = vector.multi_reduction <maximumf>, %55, %cst_41 [1] : vector<128x128xf32> to vector<128xf32>
    %57 = vector.shape_cast %56 : vector<128xf32> to vector<128x1xf32>
    %58 = vector.broadcast %57 : vector<128x1xf32> to vector<128x128xf32>
    %59 = arith.subf %55, %58 : vector<128x128xf32>
    %60 = math.exp %59 : vector<128x128xf32>
    %cst_42 = arith.constant dense<0.000000e+00> : vector<128xf32>
    %61 = vector.multi_reduction <add>, %60, %cst_42 [1] : vector<128x128xf32> to vector<128xf32>
    %62 = vector.shape_cast %61 : vector<128xf32> to vector<128x1xf32>
    %63 = tpu.reciprocal %62 {approx = true} : vector<128x1xf32> -> vector<128x1xf32>
    %64 = vector.broadcast %63 : vector<128x1xf32> to vector<128x128xf32>
    %65 = arith.mulf %60, %64 : vector<128x128xf32>
    %cst_43 = arith.constant dense<0.000000e+00> : vector<8x128xf32>
    %66 = tpu.matmul %52, %65, %cst_43 {dimension_numbers = #tpu.dot_dimension_numbers<[1], [1], [0], [0], [0, 0, 1, 0], [], []>} : vector<8x128xf32>, vector<128x128xf32>, vector<8x128xf32> -> vector<8x128xf32>
    %c16_44 = arith.constant 16 : index
    %c0_45 = arith.constant 0 : index
    %67 = vector.load %arg17[%c16_44, %c0_45] : memref<32x128xf32, #tpu.memory_space<vmem>>, vector<8x128xf32>
    tpu.vector_store %arg17[%c16_44, %c0_45], %66 {strides = array<i32>} : memref<32x128xf32, #tpu.memory_space<vmem>>, vector<8x128xf32>,
    %c24 = arith.constant 24 : index
    %c0_46 = arith.constant 0 : index
    %68 = vector.load %arg14[%c24, %c0_46] : memref<32x128xf32, #tpu.memory_space<vmem>>, vector<8x128xf32>
    %c24_47 = arith.constant 24 : index
    %c0_48 = arith.constant 0 : index
    %69 = vector.load %arg15[%c24_47, %c0_48] : memref<32x128xf32, #tpu.memory_space<vmem>>, vector<8x128xf32>
    %c24_49 = arith.constant 24 : index
    %c0_50 = arith.constant 0 : index
    %70 = vector.load %arg16[%c24_49, %c0_50] : memref<32x128xf32, #tpu.memory_space<vmem>>, vector<8x128xf32>
    %cst_51 = arith.constant dense<0.000000e+00> : vector<128x128xf32>
    %71 = tpu.matmul %68, %69, %cst_51 {dimension_numbers = #tpu.dot_dimension_numbers<[0], [0], [1], [1], [0, 1, 1, 1], [], []>} : vector<8x128xf32>, vector<8x128xf32>, vector<128x128xf32> -> vector<128x128xf32>
    %cst_52 = arith.constant -1.000000e+30 : f32
    %72 = vector.broadcast %cst_52 : f32 to vector<128x128xf32>
    %73 = arith.select %13, %71, %72 : vector<128x128xi1>, vector<128x128xf32>
    %cst_53 = arith.constant dense<0xFF800000> : vector<128xf32>
    %74 = vector.multi_reduction <maximumf>, %73, %cst_53 [1] : vector<128x128xf32> to vector<128xf32>
    %75 = vector.shape_cast %74 : vector<128xf32> to vector<128x1xf32>
    %76 = vector.broadcast %75 : vector<128x1xf32> to vector<128x128xf32>
    %77 = arith.subf %73, %76 : vector<128x128xf32>
    %78 = math.exp %77 : vector<128x128xf32>
    %cst_54 = arith.constant dense<0.000000e+00> : vector<128xf32>
    %79 = vector.multi_reduction <add>, %78, %cst_54 [1] : vector<128x128xf32> to vector<128xf32>
    %80 = vector.shape_cast %79 : vector<128xf32> to vector<128x1xf32>
    %81 = tpu.reciprocal %80 {approx = true} : vector<128x1xf32> -> vector<128x1xf32>
    %82 = vector.broadcast %81 : vector<128x1xf32> to vector<128x128xf32>
    %83 = arith.mulf %78, %82 : vector<128x128xf32>
    %cst_55 = arith.constant dense<0.000000e+00> : vector<8x128xf32>
    %84 = tpu.matmul %70, %83, %cst_55 {dimension_numbers = #tpu.dot_dimension_numbers<[1], [1], [0], [0], [0, 0, 1, 0], [], []>} : vector<8x128xf32>, vector<128x128xf32>, vector<8x128xf32> -> vector<8x128xf32>
    %c24_56 = arith.constant 24 : index
    %c0_57 = arith.constant 0 : index
    %85 = vector.load %arg17[%c24_56, %c0_57] : memref<32x128xf32, #tpu.memory_space<vmem>>, vector<8x128xf32>
    tpu.vector_store %arg17[%c24_56, %c0_57], %84 {strides = array<i32>} : memref<32x128xf32, #tpu.memory_space<vmem>>, vector<8x128xf32>,
    %c0_58 = arith.constant 0 : index
    %c0_59 = arith.constant 0 : index
    %86 = vector.load %arg8[%c0_58, %c0_59] : memref<32x32xbf16, #tpu.memory_space<vmem>>, vector<32x32xbf16>
    %c0_60 = arith.constant 0 : index
    %c0_61 = arith.constant 0 : index
    %87 = vector.load %arg17[%c0_60, %c0_61] : memref<32x128xf32, #tpu.memory_space<vmem>>, vector<32x128xf32>
    %cst_62 = arith.constant dense<0.000000e+00> : vector<32x128xf32>
    %88 = tpu.matmul %86, %87, %cst_62 {dimension_numbers = #tpu.dot_dimension_numbers<[1], [0], [0], [1], [0, 0, 1, 1], [], []>} : vector<32x32xbf16>, vector<32x128xf32>, vector<32x128xf32> -> vector<32x128xf32>
    %c0_63 = arith.constant 0 : index
    %c0_64 = arith.constant 0 : index
    %89 = vector.load %arg12[%c0_63, %c0_64] : memref<32x1xf32, #tpu.memory_space<vmem>>, vector<32x1xf32>
    %90 = vector.broadcast %89 : vector<32x1xf32> to vector<32x128xf32>
    %91 = arith.addf %88, %90 : vector<32x128xf32>
    %c0_65 = arith.constant 0 : index
    %c0_66 = arith.constant 0 : index
    %c0_67 = arith.constant 0 : index
    %92 = vector.load %arg13[%c0_65, %c0_66, %c0_67] : memref<1x32x128xf32, #tpu.memory_space<vmem>>, vector<1x32x128xf32>
    %93 = vector.shape_cast %92 : vector<1x32x128xf32> to vector<32x128xf32>
    %94 = vector.shape_cast %91 : vector<32x128xf32> to vector<1x32x128xf32>
    tpu.vector_store %arg13[%c0_65, %c0_66, %c0_67], %94 {strides = array<i32>} : memref<1x32x128xf32, #tpu.memory_space<vmem>>, vector<1x32x128xf32>,
    return
  }
  func.func @transform_0(%arg0: i32, %arg1: i32) -> (i32, i32, i32) {
    %c0_i32 = arith.constant 0 : i32
    %c0_i32_0 = arith.constant 0 : i32
    return %arg0, %c0_i32, %arg1 : i32, i32, i32
  }
  func.func @transform_1(%arg0: i32, %arg1: i32) -> (i32, i32, i32) {
    %c0_i32 = arith.constant 0 : i32
    %c0_i32_0 = arith.constant 0 : i32
    %c0_i32_1 = arith.constant 0 : i32
    return %arg0, %c0_i32, %c0_i32_0 : i32, i32, i32
  }
  func.func @transform_2(%arg0: i32, %arg1: i32) -> (i32, i32, i32) {
    %c0_i32 = arith.constant 0 : i32
    %c0_i32_0 = arith.constant 0 : i32
    %c0_i32_1 = arith.constant 0 : i32
    return %arg0, %c0_i32, %c0_i32_0 : i32, i32, i32
  }
  func.func @transform_3(%arg0: i32, %arg1: i32) -> (i32, i32) {
    %c0_i32 = arith.constant 0 : i32
    %c0_i32_0 = arith.constant 0 : i32
    %c0_i32_1 = arith.constant 0 : i32
    return %c0_i32, %c0_i32_0 : i32, i32
  }
  func.func @transform_4(%arg0: i32, %arg1: i32) -> (i32, i32) {
    %c0_i32 = arith.constant 0 : i32
    %c0_i32_0 = arith.constant 0 : i32
    %c0_i32_1 = arith.constant 0 : i32
    return %c0_i32, %c0_i32_0 : i32, i32
  }
  func.func @transform_5(%arg0: i32, %arg1: i32) -> (i32, i32) {
    %c0_i32 = arith.constant 0 : i32
    %c0_i32_0 = arith.constant 0 : i32
    %c0_i32_1 = arith.constant 0 : i32
    return %c0_i32, %c0_i32_0 : i32, i32
  }
  func.func @transform_6(%arg0: i32, %arg1: i32) -> (i32, i32) {
    %c0_i32 = arith.constant 0 : i32
    %c0_i32_0 = arith.constant 0 : i32
    %c0_i32_1 = arith.constant 0 : i32
    return %c0_i32, %c0_i32_0 : i32, i32
  }
  func.func @transform_7(%arg0: i32, %arg1: i32) -> (i32, i32) {
    %c0_i32 = arith.constant 0 : i32
    %c0_i32_0 = arith.constant 0 : i32
    %c0_i32_1 = arith.constant 0 : i32
    return %c0_i32, %c0_i32_0 : i32, i32
  }
  func.func @transform_8(%arg0: i32, %arg1: i32) -> (i32, i32) {
    %c0_i32 = arith.constant 0 : i32
    %c0_i32_0 = arith.constant 0 : i32
    %c0_i32_1 = arith.constant 0 : i32
    return %c0_i32, %c0_i32_0 : i32, i32
  }
  func.func @transform_9(%arg0: i32, %arg1: i32) -> (i32, i32) {
    %c0_i32 = arith.constant 0 : i32
    %c0_i32_0 = arith.constant 0 : i32
    %c0_i32_1 = arith.constant 0 : i32
    return %c0_i32, %c0_i32_0 : i32, i32
  }
  func.func @transform_10(%arg0: i32, %arg1: i32) -> (i32, i32) {
    %c0_i32 = arith.constant 0 : i32
    %c0_i32_0 = arith.constant 0 : i32
    %c0_i32_1 = arith.constant 0 : i32
    return %c0_i32, %c0_i32_0 : i32, i32
  }
  func.func @transform_11(%arg0: i32, %arg1: i32) -> (i32, i32, i32) {
    %c0_i32 = arith.constant 0 : i32
    %c0_i32_0 = arith.constant 0 : i32
    return %arg0, %c0_i32, %arg1 : i32, i32, i32
  }
}

</mosaic_0001>

<llo_original>
// kernel: tpu_custom_call.1
$region0: #{tpu_custom_call.1}
  #allocation0 [shape = 'u32[]', space=smem, size = 0x4, offset = 0x4, fixed_abs, tag = 'smem constant byte address 0x4 - core index']
  #allocation1 [shape = 'u32[144,128]{1,0:T(1,128)}', space=vmem, size = 0x12000, scoped, tag = 'internal scratch']
  #allocation2 [shape = 'f32[32,128]{1,0:T(8,128)}', space=vmem, size = 0x4000, scoped, tag = 'scratch operand']
  #allocation3 [shape = 'f32[32,128]{1,0:T(8,128)}', space=vmem, size = 0x4000, scoped, tag = 'scratch operand']
  #allocation4 [shape = 'f32[32,128]{1,0:T(8,128)}', space=vmem, size = 0x4000, scoped, tag = 'scratch operand']
  #allocation5 [shape = 'f32[32,128]{1,0:T(8,128)}', space=vmem, size = 0x4000, scoped, tag = 'scratch operand']
  %s0 = inlined_call_operand.vmem [shape: bf16[2,32,128], index: 0, kind: input, shape index: {}]
  %s1 = inlined_call_operand.vmem [shape: bf16[2,32,128], index: 1, kind: input, shape index: {}]
  %s2 = inlined_call_operand.vmem [shape: bf16[2,32,128], index: 2, kind: input, shape index: {}]
  %s3 = inlined_call_operand.vmem [shape: bf16[32,32], index: 3, kind: input, shape index: {}]
  %s4 = inlined_call_operand.vmem [shape: bf16[32,32], index: 4, kind: input, shape index: {}]
  %s5 = inlined_call_operand.vmem [shape: bf16[32,32], index: 5, kind: input, shape index: {}]
  %s6 = inlined_call_operand.hbm [shape: bf16[32,32], index: 6, kind: input, shape index: {}]
  %s7 = inlined_call_operand.vmem [shape: f32[32,1], index: 7, kind: input, shape index: {}]
  %s8 = inlined_call_operand.vmem [shape: f32[32,1], index: 8, kind: input, shape index: {}]
  %s9 = inlined_call_operand.vmem [shape: f32[32,1], index: 9, kind: input, shape index: {}]
  %s10 = inlined_call_operand.vmem [shape: f32[32,1], index: 10, kind: input, shape index: {}]
  %s11 = inlined_call_operand.hbm [shape: f32[2,32,128], index: 11, kind: output, shape index: {}]
  %s12 = sld [smem:[#allocation0]]
  $region85: #{tpu_custom_call.1} parent=0
    _
  %s14 = ssub.s32 1, %s12
  %s15 = scalar_select 0, %s14, %s12
  $region1: #{tpu_custom_call.1} parent=0
    #allocation6 [shape = 'u8[8192]{0}', space=vmem, size = 0x2000, scoped, tag = 'input window, operand 6, single buffered']
    #allocation7 [shape = 's32[2]{0}', space=sflag, size = 0x8, scoped, tag = 'scoped memory for tpu_custom_call.1']
    #allocation8 [shape = 's32[2]{0}', space=sflag, size = 0x8, scoped, tag = 'scoped memory for tpu_custom_call.1']
    #allocation9 [shape = 'u8[32768]{0}', space=vmem, size = 0x8000, scoped, tag = 'output window, operand 0']
    %16 = vsyncpa [#allocation7], 0
    %17 = vsyncpa [#allocation8], 0
    %s18 = scalar_lea.sflag [#allocation8], 1
    %19 = vsyncpa %s18, 0
    loop: start=0, step=1, limit=4
    $region2: #{tpu_custom_call.1} parent=1 // loop_pre_header
      _
    $region3: #{tpu_custom_call.1} parent=1 // loop_header
      %s21 = sphi 0, %s25
      %p22 = scmp.ge.s32.totalorder %s21, 4
      %s28 = sphi 0, %s40
      %s29 = sphi 0, %s36
      %s30 = sphi 0, %s28
      %s31 = sphi 0, %s29
      %s32 = sphi 0, %s30
      %s33 = sphi 0, %s31
      %s45 = sphi 0, %s47
      %s48 = sphi 0, %s45
      %s49 = sphi 0, %s48
      %s65 = sphi 0, %s49
      %s71 = sphi 0, %s73
      %s74 = sphi 0, %s71
      %s75 = sphi 0, %s74
      %s91 = sphi 0, %s75
      %s97 = sphi 0, %s99
      %s100 = sphi 0, %s97
      %s101 = sphi 0, %s100
      %s117 = sphi 0, %s101
      %s121 = sphi 0, %s121
      %s123 = sphi 0, %s121
      %s124 = sphi 0, %s123
      %s138 = sphi 0, %s124
      %s142 = sphi 0, %s142
      %s144 = sphi 0, %s142
      %s145 = sphi 0, %s144
      %s159 = sphi 0, %s145
      %s163 = sphi 0, %s163
      %s165 = sphi 0, %s163
      %s166 = sphi 0, %s165
      %s180 = sphi 0, %s166
      %s184 = sphi 0, %s184
      %s186 = sphi 0, %s184
      %s187 = sphi 0, %s186
      %s201 = sphi 0, %s187
      %s205 = sphi 0, %s205
      %s207 = sphi 0, %s205
      %s208 = sphi 0, %s207
      %s222 = sphi 0, %s208
      %s226 = sphi 0, %s226
      %s228 = sphi 0, %s226
      %s229 = sphi 0, %s228
      %s243 = sphi 0, %s229
      %s247 = sphi 0, %s247
      %s249 = sphi 0, %s247
      %s250 = sphi 0, %s249
      %s264 = sphi 0, %s250
      %s268 = sphi 0, %s268
      %s270 = sphi 0, %s268
      %s271 = sphi 0, %s270
      %s285 = sphi 0, %s271
      %s293 = sphi 0, %s295
      %s296 = sphi 0, %s293
      %s297 = sphi 0, %s296
      %s313 = sphi 0, %s297
    $region4: #{tpu_custom_call.1} parent=1 // loop_header_branch
      %24 = sbr.rel (%p22) target = $region8
    $region5: #{tpu_custom_call.1} parent=1 // loop_body
      %s26 = ssub.s32 %s21, 1
      %s27 = ssub.s32 %s21, 2
      %s34 = sadd.s32 1, %s29
      %p35 = scmp.ge.s32.totalorder %s34, 1
      %s36 = scalar_select %p35, 0, %s34
      %s37 = sadd.s32 1, %s28
      %s38 = scalar_select %p35, %s37, %s28
      %p39 = scmp.ge.s32.totalorder %s38, 2
      %s40 = scalar_select %p39, 0, %s38
      %s41 = ssub.s32 %s28, %s40
      %s42 = ssub.s32 %s29, %s36
      %s43 = sor.u32 %s41, %s42
      %p44 = scmp.eq.s32.totalorder %s43, 0
      %s46 = sadd.s32 %s45, 1
      %s47 = scalar_select %p44, %s45, %s46
      %p50 = pneg %p44
      %p51 = scmp.eq.s32.totalorder %s21, 1
      %p52 = por %p50, %p51
      %p53 = scmp.ne.s32.totalorder %s45, %s48
      %p54 = scmp.eq.s32.totalorder %s21, 0
      %p55 = por %p53, %p54
      %p56 = scmp.ne.s32.totalorder %s45, %s48
      %p57 = scmp.eq.s32.totalorder %s26, 1
      %p58 = por %p56, %p57
      %p59 = scmp.ne.s32.totalorder %s48, %s49
      %p60 = scmp.eq.s32.totalorder %s26, 0
      %p61 = por %p59, %p60
      %p62 = scmp.ne.s32.totalorder %s48, %s49
      %p63 = scmp.eq.s32.totalorder %s27, 1
      %p64 = por %p62, %p63
      %p66 = scmp.ne.s32.totalorder %s49, %s65
      %p67 = scmp.eq.s32.totalorder %s27, 0
      %p68 = por %p66, %p67
      %s69 = ssub.s32 %s28, %s40
      %p70 = scmp.eq.s32.totalorder %s69, 0
      %s72 = sadd.s32 %s71, 1
      %s73 = scalar_select %p70, %s71, %s72
      %p76 = pneg %p70
      %p77 = scmp.eq.s32.totalorder %s21, 1
      %p78 = por %p76, %p77
      %p79 = scmp.ne.s32.totalorder %s71, %s74
      %p80 = scmp.eq.s32.totalorder %s21, 0
      %p81 = por %p79, %p80
      %p82 = scmp.ne.s32.totalorder %s71, %s74
      %p83 = scmp.eq.s32.totalorder %s26, 1
      %p84 = por %p82, %p83
      %p85 = scmp.ne.s32.totalorder %s74, %s75
      %p86 = scmp.eq.s32.totalorder %s26, 0
      %p87 = por %p85, %p86
      %p88 = scmp.ne.s32.totalorder %s74, %s75
      %p89 = scmp.eq.s32.totalorder %s27, 1
      %p90 = por %p88, %p89
      %p92 = scmp.ne.s32.totalorder %s75, %s91
      %p93 = scmp.eq.s32.totalorder %s27, 0
      %p94 = por %p92, %p93
      %s95 = ssub.s32 %s28, %s40
      %p96 = scmp.eq.s32.totalorder %s95, 0
      %s98 = sadd.s32 %s97, 1
      %s99 = scalar_select %p96, %s97, %s98
      %p102 = pneg %p96
      %p103 = scmp.eq.s32.totalorder %s21, 1
      %p104 = por %p102, %p103
      %p105 = scmp.ne.s32.totalorder %s97, %s100
      %p106 = scmp.eq.s32.totalorder %s21, 0
      %p107 = por %p105, %p106
      %p108 = scmp.ne.s32.totalorder %s97, %s100
      %p109 = scmp.eq.s32.totalorder %s26, 1
      %p110 = por %p108, %p109
      %p111 = scmp.ne.s32.totalorder %s100, %s101
      %p112 = scmp.eq.s32.totalorder %s26, 0
      %p113 = por %p111, %p112
      %p114 = scmp.ne.s32.totalorder %s100, %s101
      %p115 = scmp.eq.s32.totalorder %s27, 1
      %p116 = por %p114, %p115
      %p118 = scmp.ne.s32.totalorder %s101, %s117
      %p119 = scmp.eq.s32.totalorder %s27, 0
      %p120 = por %p118, %p119
      %s122 = sadd.s32 %s121, 1
      %p125 = scmp.eq.s32.totalorder %s21, 1
      %p126 = scmp.ne.s32.totalorder %s121, %s123
      %p127 = scmp.eq.s32.totalorder %s21, 0
      %p128 = por %p126, %p127
      %p129 = scmp.ne.s32.totalorder %s121, %s123
      %p130 = scmp.eq.s32.totalorder %s26, 1
      %p131 = por %p129, %p130
      %p132 = scmp.ne.s32.totalorder %s123, %s124
      %p133 = scmp.eq.s32.totalorder %s26, 0
      %p134 = por %p132, %p133
      %p135 = scmp.ne.s32.totalorder %s123, %s124
      %p136 = scmp.eq.s32.totalorder %s27, 1
      %p137 = por %p135, %p136
      %p139 = scmp.ne.s32.totalorder %s124, %s138
      %p140 = scmp.eq.s32.totalorder %s27, 0
      %p141 = por %p139, %p140
      %s143 = sadd.s32 %s142, 1
      %p146 = scmp.eq.s32.totalorder %s21, 1
      %p147 = scmp.ne.s32.totalorder %s142, %s144
      %p148 = scmp.eq.s32.totalorder %s21, 0
      %p149 = por %p147, %p148
      %p150 = scmp.ne.s32.totalorder %s142, %s144
      %p151 = scmp.eq.s32.totalorder %s26, 1
      %p152 = por %p150, %p151
      %p153 = scmp.ne.s32.totalorder %s144, %s145
      %p154 = scmp.eq.s32.totalorder %s26, 0
      %p155 = por %p153, %p154
      %p156 = scmp.ne.s32.totalorder %s144, %s145
      %p157 = scmp.eq.s32.totalorder %s27, 1
      %p158 = por %p156, %p157
      %p160 = scmp.ne.s32.totalorder %s145, %s159
      %p161 = scmp.eq.s32.totalorder %s27, 0
      %p162 = por %p160, %p161
      %s164 = sadd.s32 %s163, 1
      %p167 = scmp.eq.s32.totalorder %s21, 1
      %p168 = scmp.ne.s32.totalorder %s163, %s165
      %p169 = scmp.eq.s32.totalorder %s21, 0
      %p170 = por %p168, %p169
      %p171 = scmp.ne.s32.totalorder %s163, %s165
      %p172 = scmp.eq.s32.totalorder %s26, 1
      %p173 = por %p171, %p172
      %p174 = scmp.ne.s32.totalorder %s165, %s166
      %p175 = scmp.eq.s32.totalorder %s26, 0
      %p176 = por %p174, %p175
      %p177 = scmp.ne.s32.totalorder %s165, %s166
      %p178 = scmp.eq.s32.totalorder %s27, 1
      %p179 = por %p177, %p178
      %p181 = scmp.ne.s32.totalorder %s166, %s180
      %p182 = scmp.eq.s32.totalorder %s27, 0
      %p183 = por %p181, %p182
      %s185 = sadd.s32 %s184, 1
      %p188 = scmp.eq.s32.totalorder %s21, 1
      %p189 = scmp.ne.s32.totalorder %s184, %s186
      %p190 = scmp.eq.s32.totalorder %s21, 0
      %p191 = por %p189, %p190
      %p192 = scmp.ne.s32.totalorder %s184, %s186
      %p193 = scmp.eq.s32.totalorder %s26, 1
      %p194 = por %p192, %p193
      %p195 = scmp.ne.s32.totalorder %s186, %s187
      %p196 = scmp.eq.s32.totalorder %s26, 0
      %p197 = por %p195, %p196
      %p198 = scmp.ne.s32.totalorder %s186, %s187
      %p199 = scmp.eq.s32.totalorder %s27, 1
      %p200 = por %p198, %p199
      %p202 = scmp.ne.s32.totalorder %s187, %s201
      %p203 = scmp.eq.s32.totalorder %s27, 0
      %p204 = por %p202, %p203
      %s206 = sadd.s32 %s205, 1
      %p209 = scmp.eq.s32.totalorder %s21, 1
      %p210 = scmp.ne.s32.totalorder %s205, %s207
      %p211 = scmp.eq.s32.totalorder %s21, 0
      %p212 = por %p210, %p211
      %p213 = scmp.ne.s32.totalorder %s205, %s207
      %p214 = scmp.eq.s32.totalorder %s26, 1
      %p215 = por %p213, %p214
      %p216 = scmp.ne.s32.totalorder %s207, %s208
      %p217 = scmp.eq.s32.totalorder %s26, 0
      %p218 = por %p216, %p217
      %p219 = scmp.ne.s32.totalorder %s207, %s208
      %p220 = scmp.eq.s32.totalorder %s27, 1
      %p221 = por %p219, %p220
      %p223 = scmp.ne.s32.totalorder %s208, %s222
      %p224 = scmp.eq.s32.totalorder %s27, 0
      %p225 = por %p223, %p224
      %s227 = sadd.s32 %s226, 1
      %p230 = scmp.eq.s32.totalorder %s21, 1
      %p231 = scmp.ne.s32.totalorder %s226, %s228
      %p232 = scmp.eq.s32.totalorder %s21, 0
      %p233 = por %p231, %p232
      %p234 = scmp.ne.s32.totalorder %s226, %s228
      %p235 = scmp.eq.s32.totalorder %s26, 1
      %p236 = por %p234, %p235
      %p237 = scmp.ne.s32.totalorder %s228, %s229
      %p238 = scmp.eq.s32.totalorder %s26, 0
      %p239 = por %p237, %p238
      %p240 = scmp.ne.s32.totalorder %s228, %s229
      %p241 = scmp.eq.s32.totalorder %s27, 1
      %p242 = por %p240, %p241
      %p244 = scmp.ne.s32.totalorder %s229, %s243
      %p245 = scmp.eq.s32.totalorder %s27, 0
      %p246 = por %p244, %p245
      %s248 = sadd.s32 %s247, 1
      %p251 = scmp.eq.s32.totalorder %s21, 1
      %p252 = scmp.ne.s32.totalorder %s247, %s249
      %p253 = scmp.eq.s32.totalorder %s21, 0
      %p254 = por %p252, %p253
      %p255 = scmp.ne.s32.totalorder %s247, %s249
      %p256 = scmp.eq.s32.totalorder %s26, 1
      %p257 = por %p255, %p256
      %p258 = scmp.ne.s32.totalorder %s249, %s250
      %p259 = scmp.eq.s32.totalorder %s26, 0
      %p260 = por %p258, %p259
      %p261 = scmp.ne.s32.totalorder %s249, %s250
      %p262 = scmp.eq.s32.totalorder %s27, 1
      %p263 = por %p261, %p262
      %p265 = scmp.ne.s32.totalorder %s250, %s264
      %p266 = scmp.eq.s32.totalorder %s27, 0
      %p267 = por %p265, %p266
      %s269 = sadd.s32 %s268, 1
      %p272 = scmp.eq.s32.totalorder %s21, 1
      %p273 = scmp.ne.s32.totalorder %s268, %s270
      %p274 = scmp.eq.s32.totalorder %s21, 0
      %p275 = por %p273, %p274
      %p276 = scmp.ne.s32.totalorder %s268, %s270
      %p277 = scmp.eq.s32.totalorder %s26, 1
      %p278 = por %p276, %p277
      %p279 = scmp.ne.s32.totalorder %s270, %s271
      %p280 = scmp.eq.s32.totalorder %s26, 0
      %p281 = por %p279, %p280
      %p282 = scmp.ne.s32.totalorder %s270, %s271
      %p283 = scmp.eq.s32.totalorder %s27, 1
      %p284 = por %p282, %p283
      %p286 = scmp.ne.s32.totalorder %s271, %s285
      %p287 = scmp.eq.s32.totalorder %s27, 0
      %p288 = por %p286, %p287
      %s289 = ssub.s32 %s28, %s40
      %s290 = ssub.s32 %s29, %s36
      %s291 = sor.u32 %s289, %s290
      %p292 = scmp.eq.s32.totalorder %s291, 0
      %s294 = sadd.s32 %s293, 1
      %s295 = scalar_select %p292, %s293, %s294
      %p298 = pneg %p292
      %p299 = scmp.eq.s32.totalorder %s21, 1
      %p300 = por %p298, %p299
      %p301 = scmp.ne.s32.totalorder %s293, %s296
      %p302 = scmp.eq.s32.totalorder %s21, 0
      %p303 = por %p301, %p302
      %p304 = scmp.ne.s32.totalorder %s293, %s296
      %p305 = scmp.eq.s32.totalorder %s26, 1
      %p306 = por %p304, %p305
      %p307 = scmp.ne.s32.totalorder %s296, %s297
      %p308 = scmp.eq.s32.totalorder %s26, 0
      %p309 = por %p307, %p308
      %p310 = scmp.ne.s32.totalorder %s296, %s297
      %p311 = scmp.eq.s32.totalorder %s27, 1
      %p312 = por %p310, %p311
      %p314 = scmp.ne.s32.totalorder %s297, %s313
      %p315 = scmp.eq.s32.totalorder %s27, 0
      %p316 = por %p314, %p315
      %p317 = scmp.le.s32.totalorder 1, %s21
      %p318 = scmp.lt.s32.totalorder %s21, 3
      %p319 = pnand %p317, %p318
      %p320 = pneg %p319
      // Predicated region
      $region9: #{tpu_custom_call.1} parent=5 // pred_check
        _
      $region10: #{tpu_custom_call.1} parent=5 // pred_check_branch
        %322 = sbr.rel (%p319) target = $region12
      $region11: #{tpu_custom_call.1} parent=5 // pred_region
        %s323 = ssub.s32 %s21, 1
        // Predicated region
        $region13: #{tpu_custom_call.1} parent=11 // pred_check
          %p324 = pneg %p134
        $region14: #{tpu_custom_call.1} parent=11 // pred_check_branch
          %326 = sbr.rel (%p324) target = $region16
        $region15: #{tpu_custom_call.1} parent=11 // pred_region
          _
        $region16: #{tpu_custom_call.1} parent=11 // pred_fallthru
          _
        // Predicated region
        $region17: #{tpu_custom_call.1} parent=11 // pred_check
          %p327 = pneg %p155
        $region18: #{tpu_custom_call.1} parent=11 // pred_check_branch
          %329 = sbr.rel (%p327) target = $region20
        $region19: #{tpu_custom_call.1} parent=11 // pred_region
          _
        $region20: #{tpu_custom_call.1} parent=11 // pred_fallthru
          _
        // Predicated region
        $region21: #{tpu_custom_call.1} parent=11 // pred_check
          %p330 = pneg %p176
        $region22: #{tpu_custom_call.1} parent=11 // pred_check_branch
          %332 = sbr.rel (%p330) target = $region24
        $region23: #{tpu_custom_call.1} parent=11 // pred_region
          _
        $region24: #{tpu_custom_call.1} parent=11 // pred_fallthru
          _
        // Predicated region
        $region25: #{tpu_custom_call.1} parent=11 // pred_check
          %p333 = pneg %p197
        $region26: #{tpu_custom_call.1} parent=11 // pred_check_branch
          %335 = sbr.rel (%p333) target = $region28
        $region27: #{tpu_custom_call.1} parent=11 // pred_region
          %s337 = ssub.s32 256, 256
          %338 = vsyncadd [#allocation7], %s337
          %s339 = sshll.u32 [#allocation6], 4
          %s340 = int_to_ptr.vmem [resolvable:$true] %s339
          %345 = dma.hbm_to_vmem [thread:$0]  %s6, 256, %s340, [#allocation7], 64, 64, 4
        $region28: #{tpu_custom_call.1} parent=11 // pred_fallthru
          _
        // Predicated region
        $region29: #{tpu_custom_call.1} parent=11 // pred_check
          %p346 = pneg %p218
        $region30: #{tpu_custom_call.1} parent=11 // pred_check_branch
          %348 = sbr.rel (%p346) target = $region32
        $region31: #{tpu_custom_call.1} parent=11 // pred_region
          _
        $region32: #{tpu_custom_call.1} parent=11 // pred_fallthru
          _
        // Predicated region
        $region33: #{tpu_custom_call.1} parent=11 // pred_check
          %p349 = pneg %p239
        $region34: #{tpu_custom_call.1} parent=11 // pred_check_branch
          %351 = sbr.rel (%p349) target = $region36
        $region35: #{tpu_custom_call.1} parent=11 // pred_region
          _
        $region36: #{tpu_custom_call.1} parent=11 // pred_fallthru
          _
        // Predicated region
        $region37: #{tpu_custom_call.1} parent=11 // pred_check
          %p352 = pneg %p260
        $region38: #{tpu_custom_call.1} parent=11 // pred_check_branch
          %354 = sbr.rel (%p352) target = $region40
        $region39: #{tpu_custom_call.1} parent=11 // pred_region
          _
        $region40: #{tpu_custom_call.1} parent=11 // pred_fallthru
          _
        // Predicated region
        $region41: #{tpu_custom_call.1} parent=11 // pred_check
          %p355 = pneg %p281
        $region42: #{tpu_custom_call.1} parent=11 // pred_check_branch
          %357 = sbr.rel (%p355) target = $region44
        $region43: #{tpu_custom_call.1} parent=11 // pred_region
          _
        $region44: #{tpu_custom_call.1} parent=11 // pred_fallthru
          _
      $region12: #{tpu_custom_call.1} parent=5 // pred_fallthru
        _
      %p358 = scmp.lt.s32.totalorder %s21, 2
      // Predicated region
      $region45: #{tpu_custom_call.1} parent=5 // pred_check
        %p359 = pneg %p358
      $region46: #{tpu_custom_call.1} parent=5 // pred_check_branch
        %361 = sbr.rel (%p359) target = $region48
      $region47: #{tpu_custom_call.1} parent=5 // pred_region
        // Predicated region
        $region49: #{tpu_custom_call.1} parent=47 // pred_check
          %p362 = pneg %p55
        $region50: #{tpu_custom_call.1} parent=47 // pred_check_branch
          %364 = sbr.rel (%p362) target = $region52
        $region51: #{tpu_custom_call.1} parent=47 // pred_region
          %p365 = scmp.lt.s32.totalorder %s28, 1
          %s366 = scalar_select %p365, %s28, 1
          %p367 = scmp.lt.s32.totalorder %s29, 0
          %s368 = scalar_select %p367, %s29, 0
          %s369 = smul.addr %s366, 4
          %s370 = sadd.s32 %s368, %s369
          %s371 = smul.addr %s370, 4
          %s372 = scalar_lea.vmem %s0, %s371
        $region52: #{tpu_custom_call.1} parent=47 // pred_fallthru
          _
        // Predicated region
        $region53: #{tpu_custom_call.1} parent=47 // pred_check
          %p373 = pneg %p81
        $region54: #{tpu_custom_call.1} parent=47 // pred_check_branch
          %375 = sbr.rel (%p373) target = $region56
        $region55: #{tpu_custom_call.1} parent=47 // pred_region
          %p376 = scmp.lt.s32.totalorder %s28, 1
          %s377 = scalar_select %p376, %s28, 1
          %s378 = smul.addr %s377, 4
          %s379 = smul.addr %s378, 4
          %s380 = scalar_lea.vmem %s1, %s379
        $region56: #{tpu_custom_call.1} parent=47 // pred_fallthru
          _
        // Predicated region
        $region57: #{tpu_custom_call.1} parent=47 // pred_check
          %p381 = pneg %p107
        $region58: #{tpu_custom_call.1} parent=47 // pred_check_branch
          %383 = sbr.rel (%p381) target = $region60
        $region59: #{tpu_custom_call.1} parent=47 // pred_region
          %p384 = scmp.lt.s32.totalorder %s28, 1
          %s385 = scalar_select %p384, %s28, 1
          %s386 = smul.addr %s385, 4
          %s387 = smul.addr %s386, 4
          %s388 = scalar_lea.vmem %s2, %s387
        $region60: #{tpu_custom_call.1} parent=47 // pred_fallthru
          _
      $region48: #{tpu_custom_call.1} parent=5 // pred_fallthru
        _
      %p389 = scmp.le.s32.totalorder 1, %s21
      %p390 = scmp.lt.s32.totalorder %s21, 3
      %p391 = pnand %p389, %p390
      %p392 = pneg %p391
      // Predicated region
      $region61: #{tpu_custom_call.1} parent=5 // pred_check
        _
      $region62: #{tpu_custom_call.1} parent=5 // pred_check_branch
        %394 = sbr.rel (%p391) target = $region64
      $region63: #{tpu_custom_call.1} parent=5 // pred_region
        %s395 = ssub.s32 %s21, 1
        // Predicated region
        $region65: #{tpu_custom_call.1} parent=63 // pred_check
          %p396 = pneg %p197
        $region66: #{tpu_custom_call.1} parent=63 // pred_check_branch
          %398 = sbr.rel (%p396) target = $region68
        $region67: #{tpu_custom_call.1} parent=63 // pred_region
          %399 = dma.done [#allocation7], 256
        $region68: #{tpu_custom_call.1} parent=63 // pred_fallthru
          _
        %p400 = scmp.lt.s32.totalorder %s30, 1
        %s401 = scalar_select %p400, %s30, 1
        %p402 = scmp.lt.s32.totalorder %s31, 0
        %s403 = scalar_select %p402, %s31, 0
        %s404 = smul.addr %s401, 4
        %s405 = sadd.s32 %s403, %s404
        %s406 = smul.addr %s405, 4
        %s407 = scalar_lea.vmem %s0, %s406
        %p408 = pneg %p61
        %p409 = pneg %p58
        %p410 = scmp.lt.s32.totalorder %s30, 1
        %s411 = scalar_select %p410, %s30, 1
        %s412 = smul.addr %s411, 4
        %s413 = smul.addr %s412, 4
        %s414 = scalar_lea.vmem %s1, %s413
        %p415 = pneg %p87
        %p416 = pneg %p84
        %p417 = scmp.lt.s32.totalorder %s30, 1
        %s418 = scalar_select %p417, %s30, 1
        %s419 = smul.addr %s418, 4
        %s420 = smul.addr %s419, 4
        %s421 = scalar_lea.vmem %s2, %s420
        %p422 = pneg %p113
        %p423 = pneg %p110
        %p424 = pneg %p134
        %p425 = pneg %p131
        %p426 = pneg %p155
        %p427 = pneg %p152
        %p428 = pneg %p176
        %p429 = pneg %p173
        %p430 = pneg %p197
        %p431 = pneg %p194
        %p432 = pneg %p218
        %p433 = pneg %p215
        %p434 = pneg %p239
        %p435 = pneg %p236
        %p436 = pneg %p260
        %p437 = pneg %p257
        %p438 = pneg %p281
        %p439 = pneg %p278
        %p440 = pneg %p309
        %p441 = pneg %p306
        %s442 = sand.u32 %s296, 1
        %s443 = scalar_lea.sflag [#allocation8], %s442
        %s444 = sand.u32 %s296, 1
        %s445 = smul.addr %s444, 32
        %s446 = scalar_lea.vmem [#allocation9], %s445
        %p447 = scmp.lt.s32.totalorder %s30, 1
        %s448 = scalar_select %p447, %s30, 1
        %p449 = scmp.lt.s32.totalorder %s31, 0
        %s450 = scalar_select %p449, %s31, 0
        %s451 = smul.addr %s448, 4
        %s452 = sadd.s32 %s450, %s451
        %s453 = smul.addr %s452, 4
        %s454 = scalar_lea.vmem %s0, %s453
        %p455 = scmp.lt.s32.totalorder %s30, 1
        %s456 = scalar_select %p455, %s30, 1
        %s457 = smul.addr %s456, 4
        %s458 = smul.addr %s457, 4
        %s459 = scalar_lea.vmem %s1, %s458
        %p460 = scmp.lt.s32.totalorder %s30, 1
        %s461 = scalar_select %p460, %s30, 1
        %s462 = smul.addr %s461, 4
        %s463 = smul.addr %s462, 4
        %s464 = scalar_lea.vmem %s2, %s463
        %p466 = scmp.eq.s32.totalorder %s31, 0
        // Predicated region
        $region69: #{tpu_custom_call.1} parent=63 // pred_check
          %p467 = pneg %p466
        $region70: #{tpu_custom_call.1} parent=63 // pred_check_branch
          %469 = sbr.rel (%p467) target = $region72
        $region71: #{tpu_custom_call.1} parent=63 // pred_region
          %v470 = vld [vmem:[%s459] sm:$0xf]
          %v471 = vld [vmem:[%s459 + $0x4] sm:$0xf]
          %v472 = vld [vmem:[%s459 + $0x8] sm:$0xf]
          %v473 = vld [vmem:[%s459 + $0xc] sm:$0xf]
          %v474 = vld [vmem:[%s464] sm:$0xf]
          %v475 = vld [vmem:[%s464 + $0x4] sm:$0xf]
          %v476 = vld [vmem:[%s464 + $0x8] sm:$0xf]
          %v477 = vld [vmem:[%s464 + $0xc] sm:$0xf]
          %v478 = vld [vmem:[%s4] sm:$0xf]
          %v479 = vld [vmem:[%s4 + $0x4] sm:$0xf]
          %v480 = vld [vmem:[%s4 + $0x8] sm:$0xf]
          %v481 = vld [vmem:[%s4 + $0xc] sm:$0xf]
          %v482 = vld [vmem:[%s8] sm:$0xff]
          %v483 = vld [vmem:[%s8 + $0x8] sm:$0xff]
          %v484 = vld [vmem:[%s8 + $0x10] sm:$0xff]
          %v485 = vld [vmem:[%s8 + $0x18] sm:$0xff]
          %487 = vset.pattern.permute.xlu0 0
          %488 = vperm.xlu0 %487, %v482
          %v489 = vpop.permute.xlu0 %488
          %492 = vset.pattern.permute.xlu0 0
          %493 = vperm.xlu0 %492, %v483
          %v494 = vpop.permute.xlu0 %493
          %497 = vset.pattern.permute.xlu0 0
          %498 = vperm.xlu0 %497, %v484
          %v499 = vpop.permute.xlu0 %498
          %502 = vset.pattern.permute.xlu0 0
          %503 = vperm.xlu0 %502, %v485
          %v504 = vpop.permute.xlu0 %503
          %v510 = vunpack.c.l.b16 %v478
          %v511 = vunpack.c.l.b16 %v479
          %v512 = vunpack.c.l.b16 %v480
          %v513 = vunpack.c.l.b16 %v481
          %v514 = vpack.c.b16 %v511, %v510
          %v515 = vpack.c.b16 %v513, %v512
          %v520 = vunpack.c.l.b16 %v470
          %v521 = vunpack.c.l.b16 %v471
          %v522 = vunpack.c.l.b16 %v472
          %v523 = vunpack.c.l.b16 %v473
          %v524 = vpack.c.b16 %v521, %v520
          %v525 = vpack.c.b16 %v523, %v522
          %vm528 = vcmask 261120
          %v530 = vsel %vm528, %v514, 0
          %v533 = vsel %vm528, %v515, 0
          %535 = vmatprep.subr.bf16.mxu0 0
          %536 = vmatpush1.bf16.msra.mxu0 %v524
          %537 = vmatprep.subr.bf16.mxu0 0
          %538 = vmatpush1.bf16.msra.mxu0 %v525
          %539 = vmatprep.subr.bf16.mxu0 0
          %540 = vmatpush1.bf16.msra.mxu0 0
          %541 = vmatprep.subr.bf16.mxu0 0
          %542 = vmatpush1.bf16.msra.mxu0 0
          %543 = vmatprep.subr.bf16.mxu0 0
          %544 = vmatpush1.bf16.msra.mxu0 0
          %545 = vmatprep.subr.bf16.mxu0 0
          %546 = vmatpush1.bf16.msra.mxu0 0
          %547 = vmatprep.subr.bf16.mxu0 0
          %548 = vmatpush1.bf16.msra.mxu0 0
          %549 = vmatprep.subr.bf16.mxu0 0
          %550 = vmatpush1.bf16.msra.mxu0 0
          %551 = vmatprep.subr.bf16.mxu0 0
          %552 = vmatpush1.bf16.msra.mxu0 0
          %553 = vmatprep.subr.bf16.mxu0 0
          %554 = vmatpush1.bf16.msra.mxu0 0
          %555 = vmatprep.subr.bf16.mxu0 0
          %556 = vmatpush1.bf16.msra.mxu0 0
          %557 = vmatprep.subr.bf16.mxu0 0
          %558 = vmatpush1.bf16.msra.mxu0 0
          %559 = vmatprep.subr.bf16.mxu0 0
          %560 = vmatpush1.bf16.msra.mxu0 0
          %561 = vmatprep.subr.bf16.mxu0 0
          %562 = vmatpush1.bf16.msra.mxu0 0
          %563 = vmatprep.subr.bf16.mxu0 0
          %564 = vmatpush1.bf16.msra.mxu0 0
          %565 = vmatprep.subr.bf16.mxu0 0
          %566 = vmatpush1.bf16.msra.mxu0 0
          %567 = vmatprep.mubr.bf16.mxu0 0
          %568 = vmatmul.mubr.bf16.gmra.mrb[0].mxu0 %v530
          %v569 = vpop.f32.mrb[0].mxu0
          %v570 = vadd.f32 %v489, %v569
          %v571 = vpop.f32.mrb[0].mxu0
          %v572 = vpop.f32.mrb[0].mxu0
          %v573 = vadd.f32 %v494, %v572
          %v574 = vpop.f32.mrb[0].mxu0
          %575 = vmatprep.mubr.bf16.mxu0 0
          %576 = vmatmul.mubr.bf16.gmra.mrb[0].mxu0 %v533
          %v577 = vpop.f32.mrb[0].mxu0
          %v578 = vadd.f32 %v499, %v577
          %v579 = vpop.f32.mrb[0].mxu0
          %v580 = vpop.f32.mrb[0].mxu0
          %v581 = vadd.f32 %v504, %v580
          %v582 = vpop.f32.mrb[0].mxu0
          %583 = vdwg.mxu0
          %584 = vst [vmem:[#allocation3] sm:$0xff] %v570
          %585 = vst [vmem:[#allocation3 + $0x8] sm:$0xff] %v573
          %586 = vst [vmem:[#allocation3 + $0x10] sm:$0xff] %v578
          %587 = vst [vmem:[#allocation3 + $0x18] sm:$0xff] %v581
          %v588 = vld [vmem:[%s5] sm:$0xf]
          %v589 = vld [vmem:[%s5 + $0x4] sm:$0xf]
          %v590 = vld [vmem:[%s5 + $0x8] sm:$0xf]
          %v591 = vld [vmem:[%s5 + $0xc] sm:$0xf]
          %v592 = vld [vmem:[%s9] sm:$0xff]
          %v593 = vld [vmem:[%s9 + $0x8] sm:$0xff]
          %v594 = vld [vmem:[%s9 + $0x10] sm:$0xff]
          %v595 = vld [vmem:[%s9 + $0x18] sm:$0xff]
          %597 = vset.pattern.permute.xlu0 0
          %598 = vperm.xlu0 %597, %v592
          %v599 = vpop.permute.xlu0 %598
          %602 = vset.pattern.permute.xlu0 0
          %603 = vperm.xlu0 %602, %v593
          %v604 = vpop.permute.xlu0 %603
          %607 = vset.pattern.permute.xlu0 0
          %608 = vperm.xlu0 %607, %v594
          %v609 = vpop.permute.xlu0 %608
          %612 = vset.pattern.permute.xlu0 0
          %613 = vperm.xlu0 %612, %v595
          %v614 = vpop.permute.xlu0 %613
          %v620 = vunpack.c.l.b16 %v588
          %v621 = vunpack.c.l.b16 %v589
          %v622 = vunpack.c.l.b16 %v590
          %v623 = vunpack.c.l.b16 %v591
          %v624 = vpack.c.b16 %v621, %v620
          %v625 = vpack.c.b16 %v623, %v622
          %v630 = vunpack.c.l.b16 %v474
          %v631 = vunpack.c.l.b16 %v475
          %v632 = vunpack.c.l.b16 %v476
          %v633 = vunpack.c.l.b16 %v477
          %v634 = vpack.c.b16 %v631, %v630
          %v635 = vpack.c.b16 %v633, %v632
          %v639 = vsel %vm528, %v624, 0
          %v642 = vsel %vm528, %v625, 0
          %644 = vmatprep.subr.bf16.mxu0 0
          %645 = vmatpush1.bf16.msra.mxu0 %v634
          %646 = vmatprep.subr.bf16.mxu0 0
          %647 = vmatpush1.bf16.msra.mxu0 %v635
          %648 = vmatprep.subr.bf16.mxu0 0
          %649 = vmatpush1.bf16.msra.mxu0 0
          %650 = vmatprep.subr.bf16.mxu0 0
          %651 = vmatpush1.bf16.msra.mxu0 0
          %652 = vmatprep.subr.bf16.mxu0 0
          %653 = vmatpush1.bf16.msra.mxu0 0
          %654 = vmatprep.subr.bf16.mxu0 0
          %655 = vmatpush1.bf16.msra.mxu0 0
          %656 = vmatprep.subr.bf16.mxu0 0
          %657 = vmatpush1.bf16.msra.mxu0 0
          %658 = vmatprep.subr.bf16.mxu0 0
          %659 = vmatpush1.bf16.msra.mxu0 0
          %660 = vmatprep.subr.bf16.mxu0 0
          %661 = vmatpush1.bf16.msra.mxu0 0
          %662 = vmatprep.subr.bf16.mxu0 0
          %663 = vmatpush1.bf16.msra.mxu0 0
          %664 = vmatprep.subr.bf16.mxu0 0
          %665 = vmatpush1.bf16.msra.mxu0 0
          %666 = vmatprep.subr.bf16.mxu0 0
          %667 = vmatpush1.bf16.msra.mxu0 0
          %668 = vmatprep.subr.bf16.mxu0 0
          %669 = vmatpush1.bf16.msra.mxu0 0
          %670 = vmatprep.subr.bf16.mxu0 0
          %671 = vmatpush1.bf16.msra.mxu0 0
          %672 = vmatprep.subr.bf16.mxu0 0
          %673 = vmatpush1.bf16.msra.mxu0 0
          %674 = vmatprep.subr.bf16.mxu0 0
          %675 = vmatpush1.bf16.msra.mxu0 0
          %676 = vmatprep.mubr.bf16.mxu0 0
          %677 = vmatmul.mubr.bf16.gmra.mrb[0].mxu0 %v639
          %v678 = vpop.f32.mrb[0].mxu0
          %v679 = vadd.f32 %v599, %v678
          %v680 = vpop.f32.mrb[0].mxu0
          %v681 = vpop.f32.mrb[0].mxu0
          %v682 = vadd.f32 %v604, %v681
          %v683 = vpop.f32.mrb[0].mxu0
          %684 = vmatprep.mubr.bf16.mxu0 0
          %685 = vmatmul.mubr.bf16.gmra.mrb[0].mxu0 %v642
          %v686 = vpop.f32.mrb[0].mxu0
          %v687 = vadd.f32 %v609, %v686
          %v688 = vpop.f32.mrb[0].mxu0
          %v689 = vpop.f32.mrb[0].mxu0
          %v690 = vadd.f32 %v614, %v689
          %v691 = vpop.f32.mrb[0].mxu0
          %692 = vdwg.mxu0
          %693 = vst [vmem:[#allocation4] sm:$0xff] %v679
          %694 = vst [vmem:[#allocation4 + $0x8] sm:$0xff] %v682
          %695 = vst [vmem:[#allocation4 + $0x10] sm:$0xff] %v687
          %696 = vst [vmem:[#allocation4 + $0x18] sm:$0xff] %v690
        $region72: #{tpu_custom_call.1} parent=63 // pred_fallthru
          _
        %v697 = vld [vmem:[%s454] sm:$0xf]
        %v698 = vld [vmem:[%s454 + $0x4] sm:$0xf]
        %v699 = vld [vmem:[%s454 + $0x8] sm:$0xf]
        %v700 = vld [vmem:[%s454 + $0xc] sm:$0xf]
        %v701 = vld [vmem:[%s3] sm:$0xf]
        %v702 = vld [vmem:[%s3 + $0x4] sm:$0xf]
        %v703 = vld [vmem:[%s3 + $0x8] sm:$0xf]
        %v704 = vld [vmem:[%s3 + $0xc] sm:$0xf]
        %v705 = vld [vmem:[%s7] sm:$0xff]
        %v706 = vld [vmem:[%s7 + $0x8] sm:$0xff]
        %v707 = vld [vmem:[%s7 + $0x10] sm:$0xff]
        %v708 = vld [vmem:[%s7 + $0x18] sm:$0xff]
        %710 = vset.pattern.permute.xlu0 0
        %711 = vperm.xlu0 %710, %v705
        %v712 = vpop.permute.xlu0 %711
        %715 = vset.pattern.permute.xlu0 0
        %716 = vperm.xlu0 %715, %v706
        %v717 = vpop.permute.xlu0 %716
        %720 = vset.pattern.permute.xlu0 0
        %721 = vperm.xlu0 %720, %v707
        %v722 = vpop.permute.xlu0 %721
        %725 = vset.pattern.permute.xlu0 0
        %726 = vperm.xlu0 %725, %v708
        %v727 = vpop.permute.xlu0 %726
        %v733 = vunpack.c.l.b16 %v701
        %v734 = vunpack.c.l.b16 %v702
        %v735 = vunpack.c.l.b16 %v703
        %v736 = vunpack.c.l.b16 %v704
        %v737 = vpack.c.b16 %v734, %v733
        %v738 = vpack.c.b16 %v736, %v735
        %v743 = vunpack.c.l.b16 %v697
        %v744 = vunpack.c.l.b16 %v698
        %v745 = vunpack.c.l.b16 %v699
        %v746 = vunpack.c.l.b16 %v700
        %v747 = vpack.c.b16 %v744, %v743
        %v748 = vpack.c.b16 %v746, %v745
        %vm751 = vcmask 261120
        %v753 = vsel %vm751, %v737, 0
        %v756 = vsel %vm751, %v738, 0
        %758 = vmatprep.subr.bf16.mxu0 0
        %759 = vmatpush1.bf16.msra.mxu0 %v747
        %760 = vmatprep.subr.bf16.mxu0 0
        %761 = vmatpush1.bf16.msra.mxu0 %v748
        %762 = vmatprep.subr.bf16.mxu0 0
        %763 = vmatpush1.bf16.msra.mxu0 0
        %764 = vmatprep.subr.bf16.mxu0 0
        %765 = vmatpush1.bf16.msra.mxu0 0
        %766 = vmatprep.subr.bf16.mxu0 0
        %767 = vmatpush1.bf16.msra.mxu0 0
        %768 = vmatprep.subr.bf16.mxu0 0
        %769 = vmatpush1.bf16.msra.mxu0 0
        %770 = vmatprep.subr.bf16.mxu0 0
        %771 = vmatpush1.bf16.msra.mxu0 0
        %772 = vmatprep.subr.bf16.mxu0 0
        %773 = vmatpush1.bf16.msra.mxu0 0
        %774 = vmatprep.subr.bf16.mxu0 0
        %775 = vmatpush1.bf16.msra.mxu0 0
        %776 = vmatprep.subr.bf16.mxu0 0
        %777 = vmatpush1.bf16.msra.mxu0 0
        %778 = vmatprep.subr.bf16.mxu0 0
        %779 = vmatpush1.bf16.msra.mxu0 0
        %780 = vmatprep.subr.bf16.mxu0 0
        %781 = vmatpush1.bf16.msra.mxu0 0
        %782 = vmatprep.subr.bf16.mxu0 0
        %783 = vmatpush1.bf16.msra.mxu0 0
        %784 = vmatprep.subr.bf16.mxu0 0
        %785 = vmatpush1.bf16.msra.mxu0 0
        %786 = vmatprep.subr.bf16.mxu0 0
        %787 = vmatpush1.bf16.msra.mxu0 0
        %788 = vmatprep.subr.bf16.mxu0 0
        %789 = vmatpush1.bf16.msra.mxu0 0
        %790 = vmatprep.mubr.bf16.mxu0 0
        %791 = vmatmul.mubr.bf16.gmra.mrb[0].mxu0 %v753
        %v792 = vpop.f32.mrb[0].mxu0
        %v793 = vadd.f32 %v712, %v792
        %v794 = vpop.f32.mrb[0].mxu0
        %v795 = vpop.f32.mrb[0].mxu0
        %v796 = vadd.f32 %v717, %v795
        %v797 = vpop.f32.mrb[0].mxu0
        %798 = vmatprep.mubr.bf16.mxu0 0
        %799 = vmatmul.mubr.bf16.gmra.mrb[0].mxu0 %v756
        %v800 = vpop.f32.mrb[0].mxu0
        %v801 = vadd.f32 %v722, %v800
        %v802 = vpop.f32.mrb[0].mxu0
        %v803 = vpop.f32.mrb[0].mxu0
        %v804 = vadd.f32 %v727, %v803
        %v805 = vpop.f32.mrb[0].mxu0
        %806 = vdwg.mxu0
        %807 = vst [vmem:[#allocation2] sm:$0xff] %v793
        %808 = vst [vmem:[#allocation2 + $0x8] sm:$0xff] %v796
        %809 = vst [vmem:[#allocation2 + $0x10] sm:$0xff] %v801
        %810 = vst [vmem:[#allocation2 + $0x18] sm:$0xff] %v804
        %v811 = vlaneseq
        %v812 = vand.u32 %v811, 127
        %vm813 = vcmp.lt.s32.totalorder %v812, 16
        %v814 = vld [vmem:[#allocation2] sm:$0xff]
        %v815 = vld [vmem:[#allocation3] sm:$0xff]
        %v816 = vld [vmem:[#allocation4] sm:$0xff]
        %817 = vxpose.xlu0.b32.start [1/16] %v814, 128
        %818 = vxpose.xlu0.b32.cont [2/16] 0.0, 128
        %819 = vxpose.xlu0.b32.cont [3/16] 0.0, 128
        %820 = vxpose.xlu0.b32.cont [4/16] 0.0, 128
        %821 = vxpose.xlu0.b32.cont [5/16] 0.0, 128
        %822 = vxpose.xlu0.b32.cont [6/16] 0.0, 128
        %823 = vxpose.xlu0.b32.cont [7/16] 0.0, 128
        %824 = vxpose.xlu0.b32.cont [8/16] 0.0, 128
        %825 = vxpose.xlu0.b32.cont [9/16] 0.0, 128
        %826 = vxpose.xlu0.b32.cont [10/16] 0.0, 128
        %827 = vxpose.xlu0.b32.cont [11/16] 0.0, 128
        %828 = vxpose.xlu0.b32.cont [12/16] 0.0, 128
        %829 = vxpose.xlu0.b32.cont [13/16] 0.0, 128
        %830 = vxpose.xlu0.b32.cont [14/16] 0.0, 128
        %831 = vxpose.xlu0.b32.cont [15/16] 0.0, 128
        %832 = vxpose.xlu0.b32.end [16/16] 0.0, 128
        %v833 = vpop.trf.xlu0
        %v834 = vpop.trf.xlu0
        %v835 = vpop.trf.xlu0
        %v836 = vpop.trf.xlu0
        %v837 = vpop.trf.xlu0
        %v838 = vpop.trf.xlu0
        %v839 = vpop.trf.xlu0
        %v840 = vpop.trf.xlu0
        %v841 = vpop.trf.xlu0
        %v842 = vpop.trf.xlu0
        %v843 = vpop.trf.xlu0
        %v844 = vpop.trf.xlu0
        %v845 = vpop.trf.xlu0
        %v846 = vpop.trf.xlu0
        %v847 = vpop.trf.xlu0
        %v848 = vpop.trf.xlu0
        %vm849 = vcmask 64512
        %v851 = vsel %vm849, %v833, 0
        %v854 = vsel %vm849, %v834, 0
        %v857 = vsel %vm849, %v835, 0
        %v860 = vsel %vm849, %v836, 0
        %v863 = vsel %vm849, %v837, 0
        %v866 = vsel %vm849, %v838, 0
        %v869 = vsel %vm849, %v839, 0
        %v872 = vsel %vm849, %v840, 0
        %v875 = vsel %vm849, %v841, 0
        %v878 = vsel %vm849, %v842, 0
        %v881 = vsel %vm849, %v843, 0
        %v884 = vsel %vm849, %v844, 0
        %v887 = vsel %vm849, %v845, 0
        %v890 = vsel %vm849, %v846, 0
        %v893 = vsel %vm849, %v847, 0
        %v896 = vsel %vm849, %v848, 0
        %898 = vmatprep.subr.mxu0 0.0
        %899 = vmatpush1.msra.mxu0 %v815
        %900 = vmatprep.subr.mxu0 0.0
        %901 = vmatpush1.msra.mxu0 0.0
        %902 = vmatprep.subr.mxu0 0.0
        %903 = vmatpush1.msra.mxu0 0.0
        %904 = vmatprep.subr.mxu0 0.0
        %905 = vmatpush1.msra.mxu0 0.0
        %906 = vmatprep.subr.mxu0 0.0
        %907 = vmatpush1.msra.mxu0 0.0
        %908 = vmatprep.subr.mxu0 0.0
        %909 = vmatpush1.msra.mxu0 0.0
        %910 = vmatprep.subr.mxu0 0.0
        %911 = vmatpush1.msra.mxu0 0.0
        %912 = vmatprep.subr.mxu0 0.0
        %913 = vmatpush1.msra.mxu0 0.0
        %914 = vmatprep.subr.mxu0 0.0
        %915 = vmatpush1.msra.mxu0 0.0
        %916 = vmatprep.subr.mxu0 0.0
        %917 = vmatpush1.msra.mxu0 0.0
        %918 = vmatprep.subr.mxu0 0.0
        %919 = vmatpush1.msra.mxu0 0.0
        %920 = vmatprep.subr.mxu0 0.0
        %921 = vmatpush1.msra.mxu0 0.0
        %922 = vmatprep.subr.mxu0 0.0
        %923 = vmatpush1.msra.mxu0 0.0
        %924 = vmatprep.subr.mxu0 0.0
        %925 = vmatpush1.msra.mxu0 0.0
        %926 = vmatprep.subr.mxu0 0.0
        %927 = vmatpush1.msra.mxu0 0.0
        %928 = vmatprep.subr.mxu0 0.0
        %929 = vmatpush1.msra.mxu0 0.0
        %930 = vmatprep.subr.mxu0 0.0
        %931 = vmatpush1.msra.mxu0 0.0
        %932 = vmatprep.subr.mxu0 0.0
        %933 = vmatpush1.msra.mxu0 0.0
        %934 = vmatprep.subr.mxu0 0.0
        %935 = vmatpush1.msra.mxu0 0.0
        %936 = vmatprep.subr.mxu0 0.0
        %937 = vmatpush1.msra.mxu0 0.0
        %938 = vmatprep.subr.mxu0 0.0
        %939 = vmatpush1.msra.mxu0 0.0
        %940 = vmatprep.subr.mxu0 0.0
        %941 = vmatpush1.msra.mxu0 0.0
        %942 = vmatprep.subr.mxu0 0.0
        %943 = vmatpush1.msra.mxu0 0.0
        %944 = vmatprep.subr.mxu0 0.0
        %945 = vmatpush1.msra.mxu0 0.0
        %946 = vmatprep.subr.mxu0 0.0
        %947 = vmatpush1.msra.mxu0 0.0
        %948 = vmatprep.subr.mxu0 0.0
        %949 = vmatpush1.msra.mxu0 0.0
        %950 = vmatprep.subr.mxu0 0.0
        %951 = vmatpush1.msra.mxu0 0.0
        %952 = vmatprep.subr.mxu0 0.0
        %953 = vmatpush1.msra.mxu0 0.0
        %954 = vmatprep.subr.mxu0 0.0
        %955 = vmatpush1.msra.mxu0 0.0
        %956 = vmatprep.subr.mxu0 0.0
        %957 = vmatpush1.msra.mxu0 0.0
        %958 = vmatprep.subr.mxu0 0.0
        %959 = vmatpush1.msra.mxu0 0.0
        %960 = vmatprep.subr.mxu0 0.0
        %961 = vmatpush1.msra.mxu0 0.0
        %962 = vmatprep.mubr.f32.mxu0 0.0
        %963 = vmatmul.mubr.f32.gmra.mrb[0].mxu0 %v851
        %v964 = vpop.f32.mrb[0].mxu0
        %v965 = vadd.f32 0.0, %v964
        %v966 = vpop.f32.mrb[0].mxu0
        %967 = vmatprep.mubr.f32.mxu0 0.0
        %968 = vmatmul.mubr.f32.gmra.mrb[0].mxu0 %v854
        %v969 = vpop.f32.mrb[0].mxu0
        %v970 = vadd.f32 0.0, %v969
        %v971 = vpop.f32.mrb[0].mxu0
        %972 = vmatprep.mubr.f32.mxu0 0.0
        %973 = vmatmul.mubr.f32.gmra.mrb[0].mxu0 %v857
        %v974 = vpop.f32.mrb[0].mxu0
        %v975 = vadd.f32 0.0, %v974
        %v976 = vpop.f32.mrb[0].mxu0
        %977 = vmatprep.mubr.f32.mxu0 0.0
        %978 = vmatmul.mubr.f32.gmra.mrb[0].mxu0 %v860
        %v979 = vpop.f32.mrb[0].mxu0
        %v980 = vadd.f32 0.0, %v979
        %v981 = vpop.f32.mrb[0].mxu0
        %982 = vmatprep.mubr.f32.mxu0 0.0
        %983 = vmatmul.mubr.f32.gmra.mrb[0].mxu0 %v863
        %v984 = vpop.f32.mrb[0].mxu0
        %v985 = vadd.f32 0.0, %v984
        %v986 = vpop.f32.mrb[0].mxu0
        %987 = vmatprep.mubr.f32.mxu0 0.0
        %988 = vmatmul.mubr.f32.gmra.mrb[0].mxu0 %v866
        %v989 = vpop.f32.mrb[0].mxu0
        %v990 = vadd.f32 0.0, %v989
        %v991 = vpop.f32.mrb[0].mxu0
        %992 = vmatprep.mubr.f32.mxu0 0.0
        %993 = vmatmul.mubr.f32.gmra.mrb[0].mxu0 %v869
        %v994 = vpop.f32.mrb[0].mxu0
        %v995 = vadd.f32 0.0, %v994
        %v996 = vpop.f32.mrb[0].mxu0
        %997 = vmatprep.mubr.f32.mxu0 0.0
        %998 = vmatmul.mubr.f32.gmra.mrb[0].mxu0 %v872
        %v999 = vpop.f32.mrb[0].mxu0
        %v1000 = vadd.f32 0.0, %v999
        %v1001 = vpop.f32.mrb[0].mxu0
        %1002 = vmatprep.mubr.f32.mxu0 0.0
        %1003 = vmatmul.mubr.f32.gmra.mrb[0].mxu0 %v875
        %v1004 = vpop.f32.mrb[0].mxu0
        %v1005 = vadd.f32 0.0, %v1004
        %v1006 = vpop.f32.mrb[0].mxu0
        %1007 = vmatprep.mubr.f32.mxu0 0.0
        %1008 = vmatmul.mubr.f32.gmra.mrb[0].mxu0 %v878
        %v1009 = vpop.f32.mrb[0].mxu0
        %v1010 = vadd.f32 0.0, %v1009
        %v1011 = vpop.f32.mrb[0].mxu0
        %1012 = vmatprep.mubr.f32.mxu0 0.0
        %1013 = vmatmul.mubr.f32.gmra.mrb[0].mxu0 %v881
        %v1014 = vpop.f32.mrb[0].mxu0
        %v1015 = vadd.f32 0.0, %v1014
        %v1016 = vpop.f32.mrb[0].mxu0
        %1017 = vmatprep.mubr.f32.mxu0 0.0
        %1018 = vmatmul.mubr.f32.gmra.mrb[0].mxu0 %v884
        %v1019 = vpop.f32.mrb[0].mxu0
        %v1020 = vadd.f32 0.0, %v1019
        %v1021 = vpop.f32.mrb[0].mxu0
        %1022 = vmatprep.mubr.f32.mxu0 0.0
        %1023 = vmatmul.mubr.f32.gmra.mrb[0].mxu0 %v887
        %v1024 = vpop.f32.mrb[0].mxu0
        %v1025 = vadd.f32 0.0, %v1024
        %v1026 = vpop.f32.mrb[0].mxu0
        %1027 = vmatprep.mubr.f32.mxu0 0.0
        %1028 = vmatmul.mubr.f32.gmra.mrb[0].mxu0 %v890
        %v1029 = vpop.f32.mrb[0].mxu0
        %v1030 = vadd.f32 0.0, %v1029
        %v1031 = vpop.f32.mrb[0].mxu0
        %1032 = vmatprep.mubr.f32.mxu0 0.0
        %1033 = vmatmul.mubr.f32.gmra.mrb[0].mxu0 %v893
        %v1034 = vpop.f32.mrb[0].mxu0
        %v1035 = vadd.f32 0.0, %v1034
        %v1036 = vpop.f32.mrb[0].mxu0
        %1037 = vmatprep.mubr.f32.mxu0 0.0
        %1038 = vmatmul.mubr.f32.gmra.mrb[0].mxu0 %v896
        %v1039 = vpop.f32.mrb[0].mxu0
        %v1040 = vadd.f32 0.0, %v1039
        %v1041 = vpop.f32.mrb[0].mxu0
        %1042 = vdwg.mxu0
        %v1043 = vsel %vm813, %v965, -1e+30
        %v1044 = vsel %vm813, %v970, -1e+30
        %v1045 = vsel %vm813, %v975, -1e+30
        %v1046 = vsel %vm813, %v980, -1e+30
        %v1047 = vsel %vm813, %v985, -1e+30
        %v1048 = vsel %vm813, %v990, -1e+30
        %v1049 = vsel %vm813, %v995, -1e+30
        %v1050 = vsel %vm813, %v1000, -1e+30
        %v1051 = vsel %vm813, %v1005, -1e+30
        %v1052 = vsel %vm813, %v1010, -1e+30
        %v1053 = vsel %vm813, %v1015, -1e+30
        %v1054 = vsel %vm813, %v1020, -1e+30
        %v1055 = vsel %vm813, %v1025, -1e+30
        %v1056 = vsel %vm813, %v1030, -1e+30
        %v1057 = vsel %vm813, %v1035, -1e+30
        %v1058 = vsel %vm813, %v1040, -1e+30
        %1059 = vmax.xlane.f32.xlu0 %v1043
        %v1060 = vpop.xlane.xlu0 %1059
        %1061 = vmax.xlane.f32.xlu0 %v1044
        %v1062 = vpop.xlane.xlu0 %1061
        %1063 = vmax.xlane.f32.xlu0 %v1045
        %v1064 = vpop.xlane.xlu0 %1063
        %1065 = vmax.xlane.f32.xlu0 %v1046
        %v1066 = vpop.xlane.xlu0 %1065
        %1067 = vmax.xlane.f32.xlu0 %v1047
        %v1068 = vpop.xlane.xlu0 %1067
        %1069 = vmax.xlane.f32.xlu0 %v1048
        %v1070 = vpop.xlane.xlu0 %1069
        %1071 = vmax.xlane.f32.xlu0 %v1049
        %v1072 = vpop.xlane.xlu0 %1071
        %1073 = vmax.xlane.f32.xlu0 %v1050
        %v1074 = vpop.xlane.xlu0 %1073
        %1075 = vmax.xlane.f32.xlu0 %v1051
        %v1076 = vpop.xlane.xlu0 %1075
        %1077 = vmax.xlane.f32.xlu0 %v1052
        %v1078 = vpop.xlane.xlu0 %1077
        %1079 = vmax.xlane.f32.xlu0 %v1053
        %v1080 = vpop.xlane.xlu0 %1079
        %1081 = vmax.xlane.f32.xlu0 %v1054
        %v1082 = vpop.xlane.xlu0 %1081
        %1083 = vmax.xlane.f32.xlu0 %v1055
        %v1084 = vpop.xlane.xlu0 %1083
        %1085 = vmax.xlane.f32.xlu0 %v1056
        %v1086 = vpop.xlane.xlu0 %1085
        %1087 = vmax.xlane.f32.xlu0 %v1057
        %v1088 = vpop.xlane.xlu0 %1087
        %1089 = vmax.xlane.f32.xlu0 %v1058
        %v1090 = vpop.xlane.xlu0 %1089
        %v1091 = vsub.f32 %v1043, %v1060
        %v1092 = vsub.f32 %v1044, %v1062
        %v1093 = vsub.f32 %v1045, %v1064
        %v1094 = vsub.f32 %v1046, %v1066
        %v1095 = vsub.f32 %v1047, %v1068
        %v1096 = vsub.f32 %v1048, %v1070
        %v1097 = vsub.f32 %v1049, %v1072
        %v1098 = vsub.f32 %v1050, %v1074
        %v1099 = vsub.f32 %v1051, %v1076
        %v1100 = vsub.f32 %v1052, %v1078
        %v1101 = vsub.f32 %v1053, %v1080
        %v1102 = vsub.f32 %v1054, %v1082
        %v1103 = vsub.f32 %v1055, %v1084
        %v1104 = vsub.f32 %v1056, %v1086
        %v1105 = vsub.f32 %v1057, %v1088
        %v1106 = vsub.f32 %v1058, %v1090
        %v1107 = vmul.f32 %v1091, 1.442695
        %v1108 = vpow.pop %v1107
        %v1109 = vmul.f32 %v1092, 1.442695
        %v1110 = vpow.pop %v1109
        %v1111 = vmul.f32 %v1093, 1.442695
        %v1112 = vpow.pop %v1111
        %v1113 = vmul.f32 %v1094, 1.442695
        %v1114 = vpow.pop %v1113
        %v1115 = vmul.f32 %v1095, 1.442695
        %v1116 = vpow.pop %v1115
        %v1117 = vmul.f32 %v1096, 1.442695
        %v1118 = vpow.pop %v1117
        %v1119 = vmul.f32 %v1097, 1.442695
        %v1120 = vpow.pop %v1119
        %v1121 = vmul.f32 %v1098, 1.442695
        %v1122 = vpow.pop %v1121
        %v1123 = vmul.f32 %v1099, 1.442695
        %v1124 = vpow.pop %v1123
        %v1125 = vmul.f32 %v1100, 1.442695
        %v1126 = vpow.pop %v1125
        %v1127 = vmul.f32 %v1101, 1.442695
        %v1128 = vpow.pop %v1127
        %v1129 = vmul.f32 %v1102, 1.442695
        %v1130 = vpow.pop %v1129
        %v1131 = vmul.f32 %v1103, 1.442695
        %v1132 = vpow.pop %v1131
        %v1133 = vmul.f32 %v1104, 1.442695
        %v1134 = vpow.pop %v1133
        %v1135 = vmul.f32 %v1105, 1.442695
        %v1136 = vpow.pop %v1135
        %v1137 = vmul.f32 %v1106, 1.442695
        %v1138 = vpow.pop %v1137
        %1139 = vadd.xlane.f32.xlu0 %v1108
        %v1140 = vpop.xlane.xlu0 %1139
        %1141 = vadd.xlane.f32.xlu0 %v1110
        %v1142 = vpop.xlane.xlu0 %1141
        %1143 = vadd.xlane.f32.xlu0 %v1112
        %v1144 = vpop.xlane.xlu0 %1143
        %1145 = vadd.xlane.f32.xlu0 %v1114
        %v1146 = vpop.xlane.xlu0 %1145
        %1147 = vadd.xlane.f32.xlu0 %v1116
        %v1148 = vpop.xlane.xlu0 %1147
        %1149 = vadd.xlane.f32.xlu0 %v1118
        %v1150 = vpop.xlane.xlu0 %1149
        %1151 = vadd.xlane.f32.xlu0 %v1120
        %v1152 = vpop.xlane.xlu0 %1151
        %1153 = vadd.xlane.f32.xlu0 %v1122
        %v1154 = vpop.xlane.xlu0 %1153
        %1155 = vadd.xlane.f32.xlu0 %v1124
        %v1156 = vpop.xlane.xlu0 %1155
        %1157 = vadd.xlane.f32.xlu0 %v1126
        %v1158 = vpop.xlane.xlu0 %1157
        %1159 = vadd.xlane.f32.xlu0 %v1128
        %v1160 = vpop.xlane.xlu0 %1159
        %1161 = vadd.xlane.f32.xlu0 %v1130
        %v1162 = vpop.xlane.xlu0 %1161
        %1163 = vadd.xlane.f32.xlu0 %v1132
        %v1164 = vpop.xlane.xlu0 %1163
        %1165 = vadd.xlane.f32.xlu0 %v1134
        %v1166 = vpop.xlane.xlu0 %1165
        %1167 = vadd.xlane.f32.xlu0 %v1136
        %v1168 = vpop.xlane.xlu0 %1167
        %1169 = vadd.xlane.f32.xlu0 %v1138
        %v1170 = vpop.xlane.xlu0 %1169
        %v1171 = vrcp.pop %v1140
        %v1172 = vrcp.pop %v1142
        %v1173 = vrcp.pop %v1144
        %v1174 = vrcp.pop %v1146
        %v1175 = vrcp.pop %v1148
        %v1176 = vrcp.pop %v1150
        %v1177 = vrcp.pop %v1152
        %v1178 = vrcp.pop %v1154
        %v1179 = vrcp.pop %v1156
        %v1180 = vrcp.pop %v1158
        %v1181 = vrcp.pop %v1160
        %v1182 = vrcp.pop %v1162
        %v1183 = vrcp.pop %v1164
        %v1184 = vrcp.pop %v1166
        %v1185 = vrcp.pop %v1168
        %v1186 = vrcp.pop %v1170
        %v1187 = vmul.f32 %v1108, %v1171
        %v1188 = vmul.f32 %v1110, %v1172
        %v1189 = vmul.f32 %v1112, %v1173
        %v1190 = vmul.f32 %v1114, %v1174
        %v1191 = vmul.f32 %v1116, %v1175
        %v1192 = vmul.f32 %v1118, %v1176
        %v1193 = vmul.f32 %v1120, %v1177
        %v1194 = vmul.f32 %v1122, %v1178
        %v1195 = vmul.f32 %v1124, %v1179
        %v1196 = vmul.f32 %v1126, %v1180
        %v1197 = vmul.f32 %v1128, %v1181
        %v1198 = vmul.f32 %v1130, %v1182
        %v1199 = vmul.f32 %v1132, %v1183
        %v1200 = vmul.f32 %v1134, %v1184
        %v1201 = vmul.f32 %v1136, %v1185
        %v1202 = vmul.f32 %v1138, %v1186
        %1203 = vmatprep.subr.mxu0 0.0
        %1204 = vmatpush1.xpose.msra.mxu0 %v1187
        %1205 = vmatprep.subr.mxu0 0.0
        %1206 = vmatpush1.xpose.msra.mxu0 %v1188
        %1207 = vmatprep.subr.mxu0 0.0
        %1208 = vmatpush1.xpose.msra.mxu0 %v1189
        %1209 = vmatprep.subr.mxu0 0.0
        %1210 = vmatpush1.xpose.msra.mxu0 %v1190
        %1211 = vmatprep.subr.mxu0 0.0
        %1212 = vmatpush1.xpose.msra.mxu0 %v1191
        %1213 = vmatprep.subr.mxu0 0.0
        %1214 = vmatpush1.xpose.msra.mxu0 %v1192
        %1215 = vmatprep.subr.mxu0 0.0
        %1216 = vmatpush1.xpose.msra.mxu0 %v1193
        %1217 = vmatprep.subr.mxu0 0.0
        %1218 = vmatpush1.xpose.msra.mxu0 %v1194
        %1219 = vmatprep.subr.mxu0 0.0
        %1220 = vmatpush1.xpose.msra.mxu0 %v1195
        %1221 = vmatprep.subr.mxu0 0.0
        %1222 = vmatpush1.xpose.msra.mxu0 %v1196
        %1223 = vmatprep.subr.mxu0 0.0
        %1224 = vmatpush1.xpose.msra.mxu0 %v1197
        %1225 = vmatprep.subr.mxu0 0.0
        %1226 = vmatpush1.xpose.msra.mxu0 %v1198
        %1227 = vmatprep.subr.mxu0 0.0
        %1228 = vmatpush1.xpose.msra.mxu0 %v1199
        %1229 = vmatprep.subr.mxu0 0.0
        %1230 = vmatpush1.xpose.msra.mxu0 %v1200
        %1231 = vmatprep.subr.mxu0 0.0
        %1232 = vmatpush1.xpose.msra.mxu0 %v1201
        %1233 = vmatprep.subr.mxu0 0.0
        %1234 = vmatpush1.xpose.msra.mxu0 %v1202
        %1235 = vmatprep.subr.mxu0 0.0
        %1236 = vmatpush1.xpose.msra.mxu0 0.0
        %1237 = vmatprep.subr.mxu0 0.0
        %1238 = vmatpush1.xpose.msra.mxu0 0.0
        %1239 = vmatprep.subr.mxu0 0.0
        %1240 = vmatpush1.xpose.msra.mxu0 0.0
        %1241 = vmatprep.subr.mxu0 0.0
        %1242 = vmatpush1.xpose.msra.mxu0 0.0
        %1243 = vmatprep.subr.mxu0 0.0
        %1244 = vmatpush1.xpose.msra.mxu0 0.0
        %1245 = vmatprep.subr.mxu0 0.0
        %1246 = vmatpush1.xpose.msra.mxu0 0.0
        %1247 = vmatprep.subr.mxu0 0.0
        %1248 = vmatpush1.xpose.msra.mxu0 0.0
        %1249 = vmatprep.subr.mxu0 0.0
        %1250 = vmatpush1.xpose.msra.mxu0 0.0
        %1251 = vmatprep.subr.mxu0 0.0
        %1252 = vmatpush1.xpose.msra.mxu0 0.0
        %1253 = vmatprep.subr.mxu0 0.0
        %1254 = vmatpush1.xpose.msra.mxu0 0.0
        %1255 = vmatprep.subr.mxu0 0.0
        %1256 = vmatpush1.xpose.msra.mxu0 0.0
        %1257 = vmatprep.subr.mxu0 0.0
        %1258 = vmatpush1.xpose.msra.mxu0 0.0
        %1259 = vmatprep.subr.mxu0 0.0
        %1260 = vmatpush1.xpose.msra.mxu0 0.0
        %1261 = vmatprep.subr.mxu0 0.0
        %1262 = vmatpush1.xpose.msra.mxu0 0.0
        %1263 = vmatprep.subr.mxu0 0.0
        %1264 = vmatpush1.xpose.msra.mxu0 0.0
        %1265 = vmatprep.subr.mxu0 0.0
        %1266 = vmatpush1.xpose.msra.mxu0 0.0
        %1267 = vmatprep.mubr.f32.mxu0 0.0
        %1268 = vmatmul.mubr.f32.gmra.mrb[0].mxu0 %v816
        %v1269 = vpop.f32.mrb[0].mxu0
        %v1270 = vadd.f32 0.0, %v1269
        %v1271 = vpop.f32.mrb[0].mxu0
        %1272 = vdwg.mxu0
        %1273 = vst [vmem:[#allocation5] sm:$0xff] %v1270
        %v1274 = vld [vmem:[#allocation2 + $0x8] sm:$0xff]
        %v1275 = vld [vmem:[#allocation3 + $0x8] sm:$0xff]
        %v1276 = vld [vmem:[#allocation4 + $0x8] sm:$0xff]
        %1277 = vxpose.xlu0.b32.start [1/16] %v1274, 128
        %1278 = vxpose.xlu0.b32.cont [2/16] 0.0, 128
        %1279 = vxpose.xlu0.b32.cont [3/16] 0.0, 128
        %1280 = vxpose.xlu0.b32.cont [4/16] 0.0, 128
        %1281 = vxpose.xlu0.b32.cont [5/16] 0.0, 128
        %1282 = vxpose.xlu0.b32.cont [6/16] 0.0, 128
        %1283 = vxpose.xlu0.b32.cont [7/16] 0.0, 128
        %1284 = vxpose.xlu0.b32.cont [8/16] 0.0, 128
        %1285 = vxpose.xlu0.b32.cont [9/16] 0.0, 128
        %1286 = vxpose.xlu0.b32.cont [10/16] 0.0, 128
        %1287 = vxpose.xlu0.b32.cont [11/16] 0.0, 128
        %1288 = vxpose.xlu0.b32.cont [12/16] 0.0, 128
        %1289 = vxpose.xlu0.b32.cont [13/16] 0.0, 128
        %1290 = vxpose.xlu0.b32.cont [14/16] 0.0, 128
        %1291 = vxpose.xlu0.b32.cont [15/16] 0.0, 128
        %1292 = vxpose.xlu0.b32.end [16/16] 0.0, 128
        %v1293 = vpop.trf.xlu0
        %v1294 = vpop.trf.xlu0
        %v1295 = vpop.trf.xlu0
        %v1296 = vpop.trf.xlu0
        %v1297 = vpop.trf.xlu0
        %v1298 = vpop.trf.xlu0
        %v1299 = vpop.trf.xlu0
        %v1300 = vpop.trf.xlu0
        %v1301 = vpop.trf.xlu0
        %v1302 = vpop.trf.xlu0
        %v1303 = vpop.trf.xlu0
        %v1304 = vpop.trf.xlu0
        %v1305 = vpop.trf.xlu0
        %v1306 = vpop.trf.xlu0
        %v1307 = vpop.trf.xlu0
        %v1308 = vpop.trf.xlu0
        %v1310 = vsel %vm849, %v1293, 0
        %v1313 = vsel %vm849, %v1294, 0
        %v1316 = vsel %vm849, %v1295, 0
        %v1319 = vsel %vm849, %v1296, 0
        %v1322 = vsel %vm849, %v1297, 0
        %v1325 = vsel %vm849, %v1298, 0
        %v1328 = vsel %vm849, %v1299, 0
        %v1331 = vsel %vm849, %v1300, 0
        %v1334 = vsel %vm849, %v1301, 0
        %v1337 = vsel %vm849, %v1302, 0
        %v1340 = vsel %vm849, %v1303, 0
        %v1343 = vsel %vm849, %v1304, 0
        %v1346 = vsel %vm849, %v1305, 0
        %v1349 = vsel %vm849, %v1306, 0
        %v1352 = vsel %vm849, %v1307, 0
        %v1355 = vsel %vm849, %v1308, 0
        %1357 = vmatprep.subr.mxu0 0.0
        %1358 = vmatpush1.msra.mxu0 %v1275
        %1359 = vmatprep.subr.mxu0 0.0
        %1360 = vmatpush1.msra.mxu0 0.0
        %1361 = vmatprep.subr.mxu0 0.0
        %1362 = vmatpush1.msra.mxu0 0.0
        %1363 = vmatprep.subr.mxu0 0.0
        %1364 = vmatpush1.msra.mxu0 0.0
        %1365 = vmatprep.subr.mxu0 0.0
        %1366 = vmatpush1.msra.mxu0 0.0
        %1367 = vmatprep.subr.mxu0 0.0
        %1368 = vmatpush1.msra.mxu0 0.0
        %1369 = vmatprep.subr.mxu0 0.0
        %1370 = vmatpush1.msra.mxu0 0.0
        %1371 = vmatprep.subr.mxu0 0.0
        %1372 = vmatpush1.msra.mxu0 0.0
        %1373 = vmatprep.subr.mxu0 0.0
        %1374 = vmatpush1.msra.mxu0 0.0
        %1375 = vmatprep.subr.mxu0 0.0
        %1376 = vmatpush1.msra.mxu0 0.0
        %1377 = vmatprep.subr.mxu0 0.0
        %1378 = vmatpush1.msra.mxu0 0.0
        %1379 = vmatprep.subr.mxu0 0.0
        %1380 = vmatpush1.msra.mxu0 0.0
        %1381 = vmatprep.subr.mxu0 0.0
        %1382 = vmatpush1.msra.mxu0 0.0
        %1383 = vmatprep.subr.mxu0 0.0
        %1384 = vmatpush1.msra.mxu0 0.0
        %1385 = vmatprep.subr.mxu0 0.0
        %1386 = vmatpush1.msra.mxu0 0.0
        %1387 = vmatprep.subr.mxu0 0.0
        %1388 = vmatpush1.msra.mxu0 0.0
        %1389 = vmatprep.subr.mxu0 0.0
        %1390 = vmatpush1.msra.mxu0 0.0
        %1391 = vmatprep.subr.mxu0 0.0
        %1392 = vmatpush1.msra.mxu0 0.0
        %1393 = vmatprep.subr.mxu0 0.0
        %1394 = vmatpush1.msra.mxu0 0.0
        %1395 = vmatprep.subr.mxu0 0.0
        %1396 = vmatpush1.msra.mxu0 0.0
        %1397 = vmatprep.subr.mxu0 0.0
        %1398 = vmatpush1.msra.mxu0 0.0
        %1399 = vmatprep.subr.mxu0 0.0
        %1400 = vmatpush1.msra.mxu0 0.0
        %1401 = vmatprep.subr.mxu0 0.0
        %1402 = vmatpush1.msra.mxu0 0.0
        %1403 = vmatprep.subr.mxu0 0.0
        %1404 = vmatpush1.msra.mxu0 0.0
        %1405 = vmatprep.subr.mxu0 0.0
        %1406 = vmatpush1.msra.mxu0 0.0
        %1407 = vmatprep.subr.mxu0 0.0
        %1408 = vmatpush1.msra.mxu0 0.0
        %1409 = vmatprep.subr.mxu0 0.0
        %1410 = vmatpush1.msra.mxu0 0.0
        %1411 = vmatprep.subr.mxu0 0.0
        %1412 = vmatpush1.msra.mxu0 0.0
        %1413 = vmatprep.subr.mxu0 0.0
        %1414 = vmatpush1.msra.mxu0 0.0
        %1415 = vmatprep.subr.mxu0 0.0
        %1416 = vmatpush1.msra.mxu0 0.0
        %1417 = vmatprep.subr.mxu0 0.0
        %1418 = vmatpush1.msra.mxu0 0.0
        %1419 = vmatprep.subr.mxu0 0.0
        %1420 = vmatpush1.msra.mxu0 0.0
        %1421 = vmatprep.mubr.f32.mxu0 0.0
        %1422 = vmatmul.mubr.f32.gmra.mrb[0].mxu0 %v1310
        %v1423 = vpop.f32.mrb[0].mxu0
        %v1424 = vadd.f32 0.0, %v1423
        %v1425 = vpop.f32.mrb[0].mxu0
        %1426 = vmatprep.mubr.f32.mxu0 0.0
        %1427 = vmatmul.mubr.f32.gmra.mrb[0].mxu0 %v1313
        %v1428 = vpop.f32.mrb[0].mxu0
        %v1429 = vadd.f32 0.0, %v1428
        %v1430 = vpop.f32.mrb[0].mxu0
        %1431 = vmatprep.mubr.f32.mxu0 0.0
        %1432 = vmatmul.mubr.f32.gmra.mrb[0].mxu0 %v1316
        %v1433 = vpop.f32.mrb[0].mxu0
        %v1434 = vadd.f32 0.0, %v1433
        %v1435 = vpop.f32.mrb[0].mxu0
        %1436 = vmatprep.mubr.f32.mxu0 0.0
        %1437 = vmatmul.mubr.f32.gmra.mrb[0].mxu0 %v1319
        %v1438 = vpop.f32.mrb[0].mxu0
        %v1439 = vadd.f32 0.0, %v1438
        %v1440 = vpop.f32.mrb[0].mxu0
        %1441 = vmatprep.mubr.f32.mxu0 0.0
        %1442 = vmatmul.mubr.f32.gmra.mrb[0].mxu0 %v1322
        %v1443 = vpop.f32.mrb[0].mxu0
        %v1444 = vadd.f32 0.0, %v1443
        %v1445 = vpop.f32.mrb[0].mxu0
        %1446 = vmatprep.mubr.f32.mxu0 0.0
        %1447 = vmatmul.mubr.f32.gmra.mrb[0].mxu0 %v1325
        %v1448 = vpop.f32.mrb[0].mxu0
        %v1449 = vadd.f32 0.0, %v1448
        %v1450 = vpop.f32.mrb[0].mxu0
        %1451 = vmatprep.mubr.f32.mxu0 0.0
        %1452 = vmatmul.mubr.f32.gmra.mrb[0].mxu0 %v1328
        %v1453 = vpop.f32.mrb[0].mxu0
        %v1454 = vadd.f32 0.0, %v1453
        %v1455 = vpop.f32.mrb[0].mxu0
        %1456 = vmatprep.mubr.f32.mxu0 0.0
        %1457 = vmatmul.mubr.f32.gmra.mrb[0].mxu0 %v1331
        %v1458 = vpop.f32.mrb[0].mxu0
        %v1459 = vadd.f32 0.0, %v1458
        %v1460 = vpop.f32.mrb[0].mxu0
        %1461 = vmatprep.mubr.f32.mxu0 0.0
        %1462 = vmatmul.mubr.f32.gmra.mrb[0].mxu0 %v1334
        %v1463 = vpop.f32.mrb[0].mxu0
        %v1464 = vadd.f32 0.0, %v1463
        %v1465 = vpop.f32.mrb[0].mxu0
        %1466 = vmatprep.mubr.f32.mxu0 0.0
        %1467 = vmatmul.mubr.f32.gmra.mrb[0].mxu0 %v1337
        %v1468 = vpop.f32.mrb[0].mxu0
        %v1469 = vadd.f32 0.0, %v1468
        %v1470 = vpop.f32.mrb[0].mxu0
        %1471 = vmatprep.mubr.f32.mxu0 0.0
        %1472 = vmatmul.mubr.f32.gmra.mrb[0].mxu0 %v1340
        %v1473 = vpop.f32.mrb[0].mxu0
        %v1474 = vadd.f32 0.0, %v1473
        %v1475 = vpop.f32.mrb[0].mxu0
        %1476 = vmatprep.mubr.f32.mxu0 0.0
        %1477 = vmatmul.mubr.f32.gmra.mrb[0].mxu0 %v1343
        %v1478 = vpop.f32.mrb[0].mxu0
        %v1479 = vadd.f32 0.0, %v1478
        %v1480 = vpop.f32.mrb[0].mxu0
        %1481 = vmatprep.mubr.f32.mxu0 0.0
        %1482 = vmatmul.mubr.f32.gmra.mrb[0].mxu0 %v1346
        %v1483 = vpop.f32.mrb[0].mxu0
        %v1484 = vadd.f32 0.0, %v1483
        %v1485 = vpop.f32.mrb[0].mxu0
        %1486 = vmatprep.mubr.f32.mxu0 0.0
        %1487 = vmatmul.mubr.f32.gmra.mrb[0].mxu0 %v1349
        %v1488 = vpop.f32.mrb[0].mxu0
        %v1489 = vadd.f32 0.0, %v1488
        %v1490 = vpop.f32.mrb[0].mxu0
        %1491 = vmatprep.mubr.f32.mxu0 0.0
        %1492 = vmatmul.mubr.f32.gmra.mrb[0].mxu0 %v1352
        %v1493 = vpop.f32.mrb[0].mxu0
        %v1494 = vadd.f32 0.0, %v1493
        %v1495 = vpop.f32.mrb[0].mxu0
        %1496 = vmatprep.mubr.f32.mxu0 0.0
        %1497 = vmatmul.mubr.f32.gmra.mrb[0].mxu0 %v1355
        %v1498 = vpop.f32.mrb[0].mxu0
        %v1499 = vadd.f32 0.0, %v1498
        %v1500 = vpop.f32.mrb[0].mxu0
        %1501 = vdwg.mxu0
        %v1502 = vsel %vm813, %v1424, -1e+30
        %v1503 = vsel %vm813, %v1429, -1e+30
        %v1504 = vsel %vm813, %v1434, -1e+30
        %v1505 = vsel %vm813, %v1439, -1e+30
        %v1506 = vsel %vm813, %v1444, -1e+30
        %v1507 = vsel %vm813, %v1449, -1e+30
        %v1508 = vsel %vm813, %v1454, -1e+30
        %v1509 = vsel %vm813, %v1459, -1e+30
        %v1510 = vsel %vm813, %v1464, -1e+30
        %v1511 = vsel %vm813, %v1469, -1e+30
        %v1512 = vsel %vm813, %v1474, -1e+30
        %v1513 = vsel %vm813, %v1479, -1e+30
        %v1514 = vsel %vm813, %v1484, -1e+30
        %v1515 = vsel %vm813, %v1489, -1e+30
        %v1516 = vsel %vm813, %v1494, -1e+30
        %v1517 = vsel %vm813, %v1499, -1e+30
        %1518 = vmax.xlane.f32.xlu0 %v1502
        %v1519 = vpop.xlane.xlu0 %1518
        %1520 = vmax.xlane.f32.xlu0 %v1503
        %v1521 = vpop.xlane.xlu0 %1520
        %1522 = vmax.xlane.f32.xlu0 %v1504
        %v1523 = vpop.xlane.xlu0 %1522
        %1524 = vmax.xlane.f32.xlu0 %v1505
        %v1525 = vpop.xlane.xlu0 %1524
        %1526 = vmax.xlane.f32.xlu0 %v1506
        %v1527 = vpop.xlane.xlu0 %1526
        %1528 = vmax.xlane.f32.xlu0 %v1507
        %v1529 = vpop.xlane.xlu0 %1528
        %1530 = vmax.xlane.f32.xlu0 %v1508
        %v1531 = vpop.xlane.xlu0 %1530
        %1532 = vmax.xlane.f32.xlu0 %v1509
        %v1533 = vpop.xlane.xlu0 %1532
        %1534 = vmax.xlane.f32.xlu0 %v1510
        %v1535 = vpop.xlane.xlu0 %1534
        %1536 = vmax.xlane.f32.xlu0 %v1511
        %v1537 = vpop.xlane.xlu0 %1536
        %1538 = vmax.xlane.f32.xlu0 %v1512
        %v1539 = vpop.xlane.xlu0 %1538
        %1540 = vmax.xlane.f32.xlu0 %v1513
        %v1541 = vpop.xlane.xlu0 %1540
        %1542 = vmax.xlane.f32.xlu0 %v1514
        %v1543 = vpop.xlane.xlu0 %1542
        %1544 = vmax.xlane.f32.xlu0 %v1515
        %v1545 = vpop.xlane.xlu0 %1544
        %1546 = vmax.xlane.f32.xlu0 %v1516
        %v1547 = vpop.xlane.xlu0 %1546
        %1548 = vmax.xlane.f32.xlu0 %v1517
        %v1549 = vpop.xlane.xlu0 %1548
        %v1550 = vsub.f32 %v1502, %v1519
        %v1551 = vsub.f32 %v1503, %v1521
        %v1552 = vsub.f32 %v1504, %v1523
        %v1553 = vsub.f32 %v1505, %v1525
        %v1554 = vsub.f32 %v1506, %v1527
        %v1555 = vsub.f32 %v1507, %v1529
        %v1556 = vsub.f32 %v1508, %v1531
        %v1557 = vsub.f32 %v1509, %v1533
        %v1558 = vsub.f32 %v1510, %v1535
        %v1559 = vsub.f32 %v1511, %v1537
        %v1560 = vsub.f32 %v1512, %v1539
        %v1561 = vsub.f32 %v1513, %v1541
        %v1562 = vsub.f32 %v1514, %v1543
        %v1563 = vsub.f32 %v1515, %v1545
        %v1564 = vsub.f32 %v1516, %v1547
        %v1565 = vsub.f32 %v1517, %v1549
        %v1566 = vmul.f32 %v1550, 1.442695
        %v1567 = vpow.pop %v1566
        %v1568 = vmul.f32 %v1551, 1.442695
        %v1569 = vpow.pop %v1568
        %v1570 = vmul.f32 %v1552, 1.442695
        %v1571 = vpow.pop %v1570
        %v1572 = vmul.f32 %v1553, 1.442695
        %v1573 = vpow.pop %v1572
        %v1574 = vmul.f32 %v1554, 1.442695
        %v1575 = vpow.pop %v1574
        %v1576 = vmul.f32 %v1555, 1.442695
        %v1577 = vpow.pop %v1576
        %v1578 = vmul.f32 %v1556, 1.442695
        %v1579 = vpow.pop %v1578
        %v1580 = vmul.f32 %v1557, 1.442695
        %v1581 = vpow.pop %v1580
        %v1582 = vmul.f32 %v1558, 1.442695
        %v1583 = vpow.pop %v1582
        %v1584 = vmul.f32 %v1559, 1.442695
        %v1585 = vpow.pop %v1584
        %v1586 = vmul.f32 %v1560, 1.442695
        %v1587 = vpow.pop %v1586
        %v1588 = vmul.f32 %v1561, 1.442695
        %v1589 = vpow.pop %v1588
        %v1590 = vmul.f32 %v1562, 1.442695
        %v1591 = vpow.pop %v1590
        %v1592 = vmul.f32 %v1563, 1.442695
        %v1593 = vpow.pop %v1592
        %v1594 = vmul.f32 %v1564, 1.442695
        %v1595 = vpow.pop %v1594
        %v1596 = vmul.f32 %v1565, 1.442695
        %v1597 = vpow.pop %v1596
        %1598 = vadd.xlane.f32.xlu0 %v1567
        %v1599 = vpop.xlane.xlu0 %1598
        %1600 = vadd.xlane.f32.xlu0 %v1569
        %v1601 = vpop.xlane.xlu0 %1600
        %1602 = vadd.xlane.f32.xlu0 %v1571
        %v1603 = vpop.xlane.xlu0 %1602
        %1604 = vadd.xlane.f32.xlu0 %v1573
        %v1605 = vpop.xlane.xlu0 %1604
        %1606 = vadd.xlane.f32.xlu0 %v1575
        %v1607 = vpop.xlane.xlu0 %1606
        %1608 = vadd.xlane.f32.xlu0 %v1577
        %v1609 = vpop.xlane.xlu0 %1608
        %1610 = vadd.xlane.f32.xlu0 %v1579
        %v1611 = vpop.xlane.xlu0 %1610
        %1612 = vadd.xlane.f32.xlu0 %v1581
        %v1613 = vpop.xlane.xlu0 %1612
        %1614 = vadd.xlane.f32.xlu0 %v1583
        %v1615 = vpop.xlane.xlu0 %1614
        %1616 = vadd.xlane.f32.xlu0 %v1585
        %v1617 = vpop.xlane.xlu0 %1616
        %1618 = vadd.xlane.f32.xlu0 %v1587
        %v1619 = vpop.xlane.xlu0 %1618
        %1620 = vadd.xlane.f32.xlu0 %v1589
        %v1621 = vpop.xlane.xlu0 %1620
        %1622 = vadd.xlane.f32.xlu0 %v1591
        %v1623 = vpop.xlane.xlu0 %1622
        %1624 = vadd.xlane.f32.xlu0 %v1593
        %v1625 = vpop.xlane.xlu0 %1624
        %1626 = vadd.xlane.f32.xlu0 %v1595
        %v1627 = vpop.xlane.xlu0 %1626
        %1628 = vadd.xlane.f32.xlu0 %v1597
        %v1629 = vpop.xlane.xlu0 %1628
        %v1630 = vrcp.pop %v1599
        %v1631 = vrcp.pop %v1601
        %v1632 = vrcp.pop %v1603
        %v1633 = vrcp.pop %v1605
        %v1634 = vrcp.pop %v1607
        %v1635 = vrcp.pop %v1609
        %v1636 = vrcp.pop %v1611
        %v1637 = vrcp.pop %v1613
        %v1638 = vrcp.pop %v1615
        %v1639 = vrcp.pop %v1617
        %v1640 = vrcp.pop %v1619
        %v1641 = vrcp.pop %v1621
        %v1642 = vrcp.pop %v1623
        %v1643 = vrcp.pop %v1625
        %v1644 = vrcp.pop %v1627
        %v1645 = vrcp.pop %v1629
        %v1646 = vmul.f32 %v1567, %v1630
        %v1647 = vmul.f32 %v1569, %v1631
        %v1648 = vmul.f32 %v1571, %v1632
        %v1649 = vmul.f32 %v1573, %v1633
        %v1650 = vmul.f32 %v1575, %v1634
        %v1651 = vmul.f32 %v1577, %v1635
        %v1652 = vmul.f32 %v1579, %v1636
        %v1653 = vmul.f32 %v1581, %v1637
        %v1654 = vmul.f32 %v1583, %v1638
        %v1655 = vmul.f32 %v1585, %v1639
        %v1656 = vmul.f32 %v1587, %v1640
        %v1657 = vmul.f32 %v1589, %v1641
        %v1658 = vmul.f32 %v1591, %v1642
        %v1659 = vmul.f32 %v1593, %v1643
        %v1660 = vmul.f32 %v1595, %v1644
        %v1661 = vmul.f32 %v1597, %v1645
        %1662 = vmatprep.subr.mxu0 0.0
        %1663 = vmatpush1.xpose.msra.mxu0 %v1646
        %1664 = vmatprep.subr.mxu0 0.0
        %1665 = vmatpush1.xpose.msra.mxu0 %v1647
        %1666 = vmatprep.subr.mxu0 0.0
        %1667 = vmatpush1.xpose.msra.mxu0 %v1648
        %1668 = vmatprep.subr.mxu0 0.0
        %1669 = vmatpush1.xpose.msra.mxu0 %v1649
        %1670 = vmatprep.subr.mxu0 0.0
        %1671 = vmatpush1.xpose.msra.mxu0 %v1650
        %1672 = vmatprep.subr.mxu0 0.0
        %1673 = vmatpush1.xpose.msra.mxu0 %v1651
        %1674 = vmatprep.subr.mxu0 0.0
        %1675 = vmatpush1.xpose.msra.mxu0 %v1652
        %1676 = vmatprep.subr.mxu0 0.0
        %1677 = vmatpush1.xpose.msra.mxu0 %v1653
        %1678 = vmatprep.subr.mxu0 0.0
        %1679 = vmatpush1.xpose.msra.mxu0 %v1654
        %1680 = vmatprep.subr.mxu0 0.0
        %1681 = vmatpush1.xpose.msra.mxu0 %v1655
        %1682 = vmatprep.subr.mxu0 0.0
        %1683 = vmatpush1.xpose.msra.mxu0 %v1656
        %1684 = vmatprep.subr.mxu0 0.0
        %1685 = vmatpush1.xpose.msra.mxu0 %v1657
        %1686 = vmatprep.subr.mxu0 0.0
        %1687 = vmatpush1.xpose.msra.mxu0 %v1658
        %1688 = vmatprep.subr.mxu0 0.0
        %1689 = vmatpush1.xpose.msra.mxu0 %v1659
        %1690 = vmatprep.subr.mxu0 0.0
        %1691 = vmatpush1.xpose.msra.mxu0 %v1660
        %1692 = vmatprep.subr.mxu0 0.0
        %1693 = vmatpush1.xpose.msra.mxu0 %v1661
        %1694 = vmatprep.subr.mxu0 0.0
        %1695 = vmatpush1.xpose.msra.mxu0 0.0
        %1696 = vmatprep.subr.mxu0 0.0
        %1697 = vmatpush1.xpose.msra.mxu0 0.0
        %1698 = vmatprep.subr.mxu0 0.0
        %1699 = vmatpush1.xpose.msra.mxu0 0.0
        %1700 = vmatprep.subr.mxu0 0.0
        %1701 = vmatpush1.xpose.msra.mxu0 0.0
        %1702 = vmatprep.subr.mxu0 0.0
        %1703 = vmatpush1.xpose.msra.mxu0 0.0
        %1704 = vmatprep.subr.mxu0 0.0
        %1705 = vmatpush1.xpose.msra.mxu0 0.0
        %1706 = vmatprep.subr.mxu0 0.0
        %1707 = vmatpush1.xpose.msra.mxu0 0.0
        %1708 = vmatprep.subr.mxu0 0.0
        %1709 = vmatpush1.xpose.msra.mxu0 0.0
        %1710 = vmatprep.subr.mxu0 0.0
        %1711 = vmatpush1.xpose.msra.mxu0 0.0
        %1712 = vmatprep.subr.mxu0 0.0
        %1713 = vmatpush1.xpose.msra.mxu0 0.0
        %1714 = vmatprep.subr.mxu0 0.0
        %1715 = vmatpush1.xpose.msra.mxu0 0.0
        %1716 = vmatprep.subr.mxu0 0.0
        %1717 = vmatpush1.xpose.msra.mxu0 0.0
        %1718 = vmatprep.subr.mxu0 0.0
        %1719 = vmatpush1.xpose.msra.mxu0 0.0
        %1720 = vmatprep.subr.mxu0 0.0
        %1721 = vmatpush1.xpose.msra.mxu0 0.0
        %1722 = vmatprep.subr.mxu0 0.0
        %1723 = vmatpush1.xpose.msra.mxu0 0.0
        %1724 = vmatprep.subr.mxu0 0.0
        %1725 = vmatpush1.xpose.msra.mxu0 0.0
        %1726 = vmatprep.mubr.f32.mxu0 0.0
        %1727 = vmatmul.mubr.f32.gmra.mrb[0].mxu0 %v1276
        %v1728 = vpop.f32.mrb[0].mxu0
        %v1729 = vadd.f32 0.0, %v1728
        %v1730 = vpop.f32.mrb[0].mxu0
        %1731 = vdwg.mxu0
        %1732 = vst [vmem:[#allocation5 + $0x8] sm:$0xff] %v1729
        %v1733 = vld [vmem:[#allocation2 + $0x10] sm:$0xff]
        %v1734 = vld [vmem:[#allocation3 + $0x10] sm:$0xff]
        %v1735 = vld [vmem:[#allocation4 + $0x10] sm:$0xff]
        %1736 = vxpose.xlu0.b32.start [1/16] %v1733, 128
        %1737 = vxpose.xlu0.b32.cont [2/16] 0.0, 128
        %1738 = vxpose.xlu0.b32.cont [3/16] 0.0, 128
        %1739 = vxpose.xlu0.b32.cont [4/16] 0.0, 128
        %1740 = vxpose.xlu0.b32.cont [5/16] 0.0, 128
        %1741 = vxpose.xlu0.b32.cont [6/16] 0.0, 128
        %1742 = vxpose.xlu0.b32.cont [7/16] 0.0, 128
        %1743 = vxpose.xlu0.b32.cont [8/16] 0.0, 128
        %1744 = vxpose.xlu0.b32.cont [9/16] 0.0, 128
        %1745 = vxpose.xlu0.b32.cont [10/16] 0.0, 128
        %1746 = vxpose.xlu0.b32.cont [11/16] 0.0, 128
        %1747 = vxpose.xlu0.b32.cont [12/16] 0.0, 128
        %1748 = vxpose.xlu0.b32.cont [13/16] 0.0, 128
        %1749 = vxpose.xlu0.b32.cont [14/16] 0.0, 128
        %1750 = vxpose.xlu0.b32.cont [15/16] 0.0, 128
        %1751 = vxpose.xlu0.b32.end [16/16] 0.0, 128
        %v1752 = vpop.trf.xlu0
        %v1753 = vpop.trf.xlu0
        %v1754 = vpop.trf.xlu0
        %v1755 = vpop.trf.xlu0
        %v1756 = vpop.trf.xlu0
        %v1757 = vpop.trf.xlu0
        %v1758 = vpop.trf.xlu0
        %v1759 = vpop.trf.xlu0
        %v1760 = vpop.trf.xlu0
        %v1761 = vpop.trf.xlu0
        %v1762 = vpop.trf.xlu0
        %v1763 = vpop.trf.xlu0
        %v1764 = vpop.trf.xlu0
        %v1765 = vpop.trf.xlu0
        %v1766 = vpop.trf.xlu0
        %v1767 = vpop.trf.xlu0
        %v1769 = vsel %vm849, %v1752, 0
        %v1772 = vsel %vm849, %v1753, 0
        %v1775 = vsel %vm849, %v1754, 0
        %v1778 = vsel %vm849, %v1755, 0
        %v1781 = vsel %vm849, %v1756, 0
        %v1784 = vsel %vm849, %v1757, 0
        %v1787 = vsel %vm849, %v1758, 0
        %v1790 = vsel %vm849, %v1759, 0
        %v1793 = vsel %vm849, %v1760, 0
        %v1796 = vsel %vm849, %v1761, 0
        %v1799 = vsel %vm849, %v1762, 0
        %v1802 = vsel %vm849, %v1763, 0
        %v1805 = vsel %vm849, %v1764, 0
        %v1808 = vsel %vm849, %v1765, 0
        %v1811 = vsel %vm849, %v1766, 0
        %v1814 = vsel %vm849, %v1767, 0
        %1816 = vmatprep.subr.mxu0 0.0
        %1817 = vmatpush1.msra.mxu0 %v1734
        %1818 = vmatprep.subr.mxu0 0.0
        %1819 = vmatpush1.msra.mxu0 0.0
        %1820 = vmatprep.subr.mxu0 0.0
        %1821 = vmatpush1.msra.mxu0 0.0
        %1822 = vmatprep.subr.mxu0 0.0
        %1823 = vmatpush1.msra.mxu0 0.0
        %1824 = vmatprep.subr.mxu0 0.0
        %1825 = vmatpush1.msra.mxu0 0.0
        %1826 = vmatprep.subr.mxu0 0.0
        %1827 = vmatpush1.msra.mxu0 0.0
        %1828 = vmatprep.subr.mxu0 0.0
        %1829 = vmatpush1.msra.mxu0 0.0
        %1830 = vmatprep.subr.mxu0 0.0
        %1831 = vmatpush1.msra.mxu0 0.0
        %1832 = vmatprep.subr.mxu0 0.0
        %1833 = vmatpush1.msra.mxu0 0.0
        %1834 = vmatprep.subr.mxu0 0.0
        %1835 = vmatpush1.msra.mxu0 0.0
        %1836 = vmatprep.subr.mxu0 0.0
        %1837 = vmatpush1.msra.mxu0 0.0
        %1838 = vmatprep.subr.mxu0 0.0
        %1839 = vmatpush1.msra.mxu0 0.0
        %1840 = vmatprep.subr.mxu0 0.0
        %1841 = vmatpush1.msra.mxu0 0.0
        %1842 = vmatprep.subr.mxu0 0.0
        %1843 = vmatpush1.msra.mxu0 0.0
        %1844 = vmatprep.subr.mxu0 0.0
        %1845 = vmatpush1.msra.mxu0 0.0
        %1846 = vmatprep.subr.mxu0 0.0
        %1847 = vmatpush1.msra.mxu0 0.0
        %1848 = vmatprep.subr.mxu0 0.0
        %1849 = vmatpush1.msra.mxu0 0.0
        %1850 = vmatprep.subr.mxu0 0.0
        %1851 = vmatpush1.msra.mxu0 0.0
        %1852 = vmatprep.subr.mxu0 0.0
        %1853 = vmatpush1.msra.mxu0 0.0
        %1854 = vmatprep.subr.mxu0 0.0
        %1855 = vmatpush1.msra.mxu0 0.0
        %1856 = vmatprep.subr.mxu0 0.0
        %1857 = vmatpush1.msra.mxu0 0.0
        %1858 = vmatprep.subr.mxu0 0.0
        %1859 = vmatpush1.msra.mxu0 0.0
        %1860 = vmatprep.subr.mxu0 0.0
        %1861 = vmatpush1.msra.mxu0 0.0
        %1862 = vmatprep.subr.mxu0 0.0
        %1863 = vmatpush1.msra.mxu0 0.0
        %1864 = vmatprep.subr.mxu0 0.0
        %1865 = vmatpush1.msra.mxu0 0.0
        %1866 = vmatprep.subr.mxu0 0.0
        %1867 = vmatpush1.msra.mxu0 0.0
        %1868 = vmatprep.subr.mxu0 0.0
        %1869 = vmatpush1.msra.mxu0 0.0
        %1870 = vmatprep.subr.mxu0 0.0
        %1871 = vmatpush1.msra.mxu0 0.0
        %1872 = vmatprep.subr.mxu0 0.0
        %1873 = vmatpush1.msra.mxu0 0.0
        %1874 = vmatprep.subr.mxu0 0.0
        %1875 = vmatpush1.msra.mxu0 0.0
        %1876 = vmatprep.subr.mxu0 0.0
        %1877 = vmatpush1.msra.mxu0 0.0
        %1878 = vmatprep.subr.mxu0 0.0
        %1879 = vmatpush1.msra.mxu0 0.0
        %1880 = vmatprep.mubr.f32.mxu0 0.0
        %1881 = vmatmul.mubr.f32.gmra.mrb[0].mxu0 %v1769
        %v1882 = vpop.f32.mrb[0].mxu0
        %v1883 = vadd.f32 0.0, %v1882
        %v1884 = vpop.f32.mrb[0].mxu0
        %1885 = vmatprep.mubr.f32.mxu0 0.0
        %1886 = vmatmul.mubr.f32.gmra.mrb[0].mxu0 %v1772
        %v1887 = vpop.f32.mrb[0].mxu0
        %v1888 = vadd.f32 0.0, %v1887
        %v1889 = vpop.f32.mrb[0].mxu0
        %1890 = vmatprep.mubr.f32.mxu0 0.0
        %1891 = vmatmul.mubr.f32.gmra.mrb[0].mxu0 %v1775
        %v1892 = vpop.f32.mrb[0].mxu0
        %v1893 = vadd.f32 0.0, %v1892
        %v1894 = vpop.f32.mrb[0].mxu0
        %1895 = vmatprep.mubr.f32.mxu0 0.0
        %1896 = vmatmul.mubr.f32.gmra.mrb[0].mxu0 %v1778
        %v1897 = vpop.f32.mrb[0].mxu0
        %v1898 = vadd.f32 0.0, %v1897
        %v1899 = vpop.f32.mrb[0].mxu0
        %1900 = vmatprep.mubr.f32.mxu0 0.0
        %1901 = vmatmul.mubr.f32.gmra.mrb[0].mxu0 %v1781
        %v1902 = vpop.f32.mrb[0].mxu0
        %v1903 = vadd.f32 0.0, %v1902
        %v1904 = vpop.f32.mrb[0].mxu0
        %1905 = vmatprep.mubr.f32.mxu0 0.0
        %1906 = vmatmul.mubr.f32.gmra.mrb[0].mxu0 %v1784
        %v1907 = vpop.f32.mrb[0].mxu0
        %v1908 = vadd.f32 0.0, %v1907
        %v1909 = vpop.f32.mrb[0].mxu0
        %1910 = vmatprep.mubr.f32.mxu0 0.0
        %1911 = vmatmul.mubr.f32.gmra.mrb[0].mxu0 %v1787
        %v1912 = vpop.f32.mrb[0].mxu0
        %v1913 = vadd.f32 0.0, %v1912
        %v1914 = vpop.f32.mrb[0].mxu0
        %1915 = vmatprep.mubr.f32.mxu0 0.0
        %1916 = vmatmul.mubr.f32.gmra.mrb[0].mxu0 %v1790
        %v1917 = vpop.f32.mrb[0].mxu0
        %v1918 = vadd.f32 0.0, %v1917
        %v1919 = vpop.f32.mrb[0].mxu0
        %1920 = vmatprep.mubr.f32.mxu0 0.0
        %1921 = vmatmul.mubr.f32.gmra.mrb[0].mxu0 %v1793
        %v1922 = vpop.f32.mrb[0].mxu0
        %v1923 = vadd.f32 0.0, %v1922
        %v1924 = vpop.f32.mrb[0].mxu0
        %1925 = vmatprep.mubr.f32.mxu0 0.0
        %1926 = vmatmul.mubr.f32.gmra.mrb[0].mxu0 %v1796
        %v1927 = vpop.f32.mrb[0].mxu0
        %v1928 = vadd.f32 0.0, %v1927
        %v1929 = vpop.f32.mrb[0].mxu0
        %1930 = vmatprep.mubr.f32.mxu0 0.0
        %1931 = vmatmul.mubr.f32.gmra.mrb[0].mxu0 %v1799
        %v1932 = vpop.f32.mrb[0].mxu0
        %v1933 = vadd.f32 0.0, %v1932
        %v1934 = vpop.f32.mrb[0].mxu0
        %1935 = vmatprep.mubr.f32.mxu0 0.0
        %1936 = vmatmul.mubr.f32.gmra.mrb[0].mxu0 %v1802
        %v1937 = vpop.f32.mrb[0].mxu0
        %v1938 = vadd.f32 0.0, %v1937
        %v1939 = vpop.f32.mrb[0].mxu0
        %1940 = vmatprep.mubr.f32.mxu0 0.0
        %1941 = vmatmul.mubr.f32.gmra.mrb[0].mxu0 %v1805
        %v1942 = vpop.f32.mrb[0].mxu0
        %v1943 = vadd.f32 0.0, %v1942
        %v1944 = vpop.f32.mrb[0].mxu0
        %1945 = vmatprep.mubr.f32.mxu0 0.0
        %1946 = vmatmul.mubr.f32.gmra.mrb[0].mxu0 %v1808
        %v1947 = vpop.f32.mrb[0].mxu0
        %v1948 = vadd.f32 0.0, %v1947
        %v1949 = vpop.f32.mrb[0].mxu0
        %1950 = vmatprep.mubr.f32.mxu0 0.0
        %1951 = vmatmul.mubr.f32.gmra.mrb[0].mxu0 %v1811
        %v1952 = vpop.f32.mrb[0].mxu0
        %v1953 = vadd.f32 0.0, %v1952
        %v1954 = vpop.f32.mrb[0].mxu0
        %1955 = vmatprep.mubr.f32.mxu0 0.0
        %1956 = vmatmul.mubr.f32.gmra.mrb[0].mxu0 %v1814
        %v1957 = vpop.f32.mrb[0].mxu0
        %v1958 = vadd.f32 0.0, %v1957
        %v1959 = vpop.f32.mrb[0].mxu0
        %1960 = vdwg.mxu0
        %v1961 = vsel %vm813, %v1883, -1e+30
        %v1962 = vsel %vm813, %v1888, -1e+30
        %v1963 = vsel %vm813, %v1893, -1e+30
        %v1964 = vsel %vm813, %v1898, -1e+30
        %v1965 = vsel %vm813, %v1903, -1e+30
        %v1966 = vsel %vm813, %v1908, -1e+30
        %v1967 = vsel %vm813, %v1913, -1e+30
        %v1968 = vsel %vm813, %v1918, -1e+30
        %v1969 = vsel %vm813, %v1923, -1e+30
        %v1970 = vsel %vm813, %v1928, -1e+30
        %v1971 = vsel %vm813, %v1933, -1e+30
        %v1972 = vsel %vm813, %v1938, -1e+30
        %v1973 = vsel %vm813, %v1943, -1e+30
        %v1974 = vsel %vm813, %v1948, -1e+30
        %v1975 = vsel %vm813, %v1953, -1e+30
        %v1976 = vsel %vm813, %v1958, -1e+30
        %1977 = vmax.xlane.f32.xlu0 %v1961
        %v1978 = vpop.xlane.xlu0 %1977
        %1979 = vmax.xlane.f32.xlu0 %v1962
        %v1980 = vpop.xlane.xlu0 %1979
        %1981 = vmax.xlane.f32.xlu0 %v1963
        %v1982 = vpop.xlane.xlu0 %1981
        %1983 = vmax.xlane.f32.xlu0 %v1964
        %v1984 = vpop.xlane.xlu0 %1983
        %1985 = vmax.xlane.f32.xlu0 %v1965
        %v1986 = vpop.xlane.xlu0 %1985
        %1987 = vmax.xlane.f32.xlu0 %v1966
        %v1988 = vpop.xlane.xlu0 %1987
        %1989 = vmax.xlane.f32.xlu0 %v1967
        %v1990 = vpop.xlane.xlu0 %1989
        %1991 = vmax.xlane.f32.xlu0 %v1968
        %v1992 = vpop.xlane.xlu0 %1991
        %1993 = vmax.xlane.f32.xlu0 %v1969
        %v1994 = vpop.xlane.xlu0 %1993
        %1995 = vmax.xlane.f32.xlu0 %v1970
        %v1996 = vpop.xlane.xlu0 %1995
        %1997 = vmax.xlane.f32.xlu0 %v1971
        %v1998 = vpop.xlane.xlu0 %1997
        %1999 = vmax.xlane.f32.xlu0 %v1972
        %v2000 = vpop.xlane.xlu0 %1999
        %2001 = vmax.xlane.f32.xlu0 %v1973
        %v2002 = vpop.xlane.xlu0 %2001
        %2003 = vmax.xlane.f32.xlu0 %v1974
        %v2004 = vpop.xlane.xlu0 %2003
        %2005 = vmax.xlane.f32.xlu0 %v1975
        %v2006 = vpop.xlane.xlu0 %2005
        %2007 = vmax.xlane.f32.xlu0 %v1976
        %v2008 = vpop.xlane.xlu0 %2007
        %v2009 = vsub.f32 %v1961, %v1978
        %v2010 = vsub.f32 %v1962, %v1980
        %v2011 = vsub.f32 %v1963, %v1982
        %v2012 = vsub.f32 %v1964, %v1984
        %v2013 = vsub.f32 %v1965, %v1986
        %v2014 = vsub.f32 %v1966, %v1988
        %v2015 = vsub.f32 %v1967, %v1990
        %v2016 = vsub.f32 %v1968, %v1992
        %v2017 = vsub.f32 %v1969, %v1994
        %v2018 = vsub.f32 %v1970, %v1996
        %v2019 = vsub.f32 %v1971, %v1998
        %v2020 = vsub.f32 %v1972, %v2000
        %v2021 = vsub.f32 %v1973, %v2002
        %v2022 = vsub.f32 %v1974, %v2004
        %v2023 = vsub.f32 %v1975, %v2006
        %v2024 = vsub.f32 %v1976, %v2008
        %v2025 = vmul.f32 %v2009, 1.442695
        %v2026 = vpow.pop %v2025
        %v2027 = vmul.f32 %v2010, 1.442695
        %v2028 = vpow.pop %v2027
        %v2029 = vmul.f32 %v2011, 1.442695
        %v2030 = vpow.pop %v2029
        %v2031 = vmul.f32 %v2012, 1.442695
        %v2032 = vpow.pop %v2031
        %v2033 = vmul.f32 %v2013, 1.442695
        %v2034 = vpow.pop %v2033
        %v2035 = vmul.f32 %v2014, 1.442695
        %v2036 = vpow.pop %v2035
        %v2037 = vmul.f32 %v2015, 1.442695
        %v2038 = vpow.pop %v2037
        %v2039 = vmul.f32 %v2016, 1.442695
        %v2040 = vpow.pop %v2039
        %v2041 = vmul.f32 %v2017, 1.442695
        %v2042 = vpow.pop %v2041
        %v2043 = vmul.f32 %v2018, 1.442695
        %v2044 = vpow.pop %v2043
        %v2045 = vmul.f32 %v2019, 1.442695
        %v2046 = vpow.pop %v2045
        %v2047 = vmul.f32 %v2020, 1.442695
        %v2048 = vpow.pop %v2047
        %v2049 = vmul.f32 %v2021, 1.442695
        %v2050 = vpow.pop %v2049
        %v2051 = vmul.f32 %v2022, 1.442695
        %v2052 = vpow.pop %v2051
        %v2053 = vmul.f32 %v2023, 1.442695
        %v2054 = vpow.pop %v2053
        %v2055 = vmul.f32 %v2024, 1.442695
        %v2056 = vpow.pop %v2055
        %2057 = vadd.xlane.f32.xlu0 %v2026
        %v2058 = vpop.xlane.xlu0 %2057
        %2059 = vadd.xlane.f32.xlu0 %v2028
        %v2060 = vpop.xlane.xlu0 %2059
        %2061 = vadd.xlane.f32.xlu0 %v2030
        %v2062 = vpop.xlane.xlu0 %2061
        %2063 = vadd.xlane.f32.xlu0 %v2032
        %v2064 = vpop.xlane.xlu0 %2063
        %2065 = vadd.xlane.f32.xlu0 %v2034
        %v2066 = vpop.xlane.xlu0 %2065
        %2067 = vadd.xlane.f32.xlu0 %v2036
        %v2068 = vpop.xlane.xlu0 %2067
        %2069 = vadd.xlane.f32.xlu0 %v2038
        %v2070 = vpop.xlane.xlu0 %2069
        %2071 = vadd.xlane.f32.xlu0 %v2040
        %v2072 = vpop.xlane.xlu0 %2071
        %2073 = vadd.xlane.f32.xlu0 %v2042
        %v2074 = vpop.xlane.xlu0 %2073
        %2075 = vadd.xlane.f32.xlu0 %v2044
        %v2076 = vpop.xlane.xlu0 %2075
        %2077 = vadd.xlane.f32.xlu0 %v2046
        %v2078 = vpop.xlane.xlu0 %2077
        %2079 = vadd.xlane.f32.xlu0 %v2048
        %v2080 = vpop.xlane.xlu0 %2079
        %2081 = vadd.xlane.f32.xlu0 %v2050
        %v2082 = vpop.xlane.xlu0 %2081
        %2083 = vadd.xlane.f32.xlu0 %v2052
        %v2084 = vpop.xlane.xlu0 %2083
        %2085 = vadd.xlane.f32.xlu0 %v2054
        %v2086 = vpop.xlane.xlu0 %2085
        %2087 = vadd.xlane.f32.xlu0 %v2056
        %v2088 = vpop.xlane.xlu0 %2087
        %v2089 = vrcp.pop %v2058
        %v2090 = vrcp.pop %v2060
        %v2091 = vrcp.pop %v2062
        %v2092 = vrcp.pop %v2064
        %v2093 = vrcp.pop %v2066
        %v2094 = vrcp.pop %v2068
        %v2095 = vrcp.pop %v2070
        %v2096 = vrcp.pop %v2072
        %v2097 = vrcp.pop %v2074
        %v2098 = vrcp.pop %v2076
        %v2099 = vrcp.pop %v2078
        %v2100 = vrcp.pop %v2080
        %v2101 = vrcp.pop %v2082
        %v2102 = vrcp.pop %v2084
        %v2103 = vrcp.pop %v2086
        %v2104 = vrcp.pop %v2088
        %v2105 = vmul.f32 %v2026, %v2089
        %v2106 = vmul.f32 %v2028, %v2090
        %v2107 = vmul.f32 %v2030, %v2091
        %v2108 = vmul.f32 %v2032, %v2092
        %v2109 = vmul.f32 %v2034, %v2093
        %v2110 = vmul.f32 %v2036, %v2094
        %v2111 = vmul.f32 %v2038, %v2095
        %v2112 = vmul.f32 %v2040, %v2096
        %v2113 = vmul.f32 %v2042, %v2097
        %v2114 = vmul.f32 %v2044, %v2098
        %v2115 = vmul.f32 %v2046, %v2099
        %v2116 = vmul.f32 %v2048, %v2100
        %v2117 = vmul.f32 %v2050, %v2101
        %v2118 = vmul.f32 %v2052, %v2102
        %v2119 = vmul.f32 %v2054, %v2103
        %v2120 = vmul.f32 %v2056, %v2104
        %2121 = vmatprep.subr.mxu0 0.0
        %2122 = vmatpush1.xpose.msra.mxu0 %v2105
        %2123 = vmatprep.subr.mxu0 0.0
        %2124 = vmatpush1.xpose.msra.mxu0 %v2106
        %2125 = vmatprep.subr.mxu0 0.0
        %2126 = vmatpush1.xpose.msra.mxu0 %v2107
        %2127 = vmatprep.subr.mxu0 0.0
        %2128 = vmatpush1.xpose.msra.mxu0 %v2108
        %2129 = vmatprep.subr.mxu0 0.0
        %2130 = vmatpush1.xpose.msra.mxu0 %v2109
        %2131 = vmatprep.subr.mxu0 0.0
        %2132 = vmatpush1.xpose.msra.mxu0 %v2110
        %2133 = vmatprep.subr.mxu0 0.0
        %2134 = vmatpush1.xpose.msra.mxu0 %v2111
        %2135 = vmatprep.subr.mxu0 0.0
        %2136 = vmatpush1.xpose.msra.mxu0 %v2112
        %2137 = vmatprep.subr.mxu0 0.0
        %2138 = vmatpush1.xpose.msra.mxu0 %v2113
        %2139 = vmatprep.subr.mxu0 0.0
        %2140 = vmatpush1.xpose.msra.mxu0 %v2114
        %2141 = vmatprep.subr.mxu0 0.0
        %2142 = vmatpush1.xpose.msra.mxu0 %v2115
        %2143 = vmatprep.subr.mxu0 0.0
        %2144 = vmatpush1.xpose.msra.mxu0 %v2116
        %2145 = vmatprep.subr.mxu0 0.0
        %2146 = vmatpush1.xpose.msra.mxu0 %v2117
        %2147 = vmatprep.subr.mxu0 0.0
        %2148 = vmatpush1.xpose.msra.mxu0 %v2118
        %2149 = vmatprep.subr.mxu0 0.0
        %2150 = vmatpush1.xpose.msra.mxu0 %v2119
        %2151 = vmatprep.subr.mxu0 0.0
        %2152 = vmatpush1.xpose.msra.mxu0 %v2120
        %2153 = vmatprep.subr.mxu0 0.0
        %2154 = vmatpush1.xpose.msra.mxu0 0.0
        %2155 = vmatprep.subr.mxu0 0.0
        %2156 = vmatpush1.xpose.msra.mxu0 0.0
        %2157 = vmatprep.subr.mxu0 0.0
        %2158 = vmatpush1.xpose.msra.mxu0 0.0
        %2159 = vmatprep.subr.mxu0 0.0
        %2160 = vmatpush1.xpose.msra.mxu0 0.0
        %2161 = vmatprep.subr.mxu0 0.0
        %2162 = vmatpush1.xpose.msra.mxu0 0.0
        %2163 = vmatprep.subr.mxu0 0.0
        %2164 = vmatpush1.xpose.msra.mxu0 0.0
        %2165 = vmatprep.subr.mxu0 0.0
        %2166 = vmatpush1.xpose.msra.mxu0 0.0
        %2167 = vmatprep.subr.mxu0 0.0
        %2168 = vmatpush1.xpose.msra.mxu0 0.0
        %2169 = vmatprep.subr.mxu0 0.0
        %2170 = vmatpush1.xpose.msra.mxu0 0.0
        %2171 = vmatprep.subr.mxu0 0.0
        %2172 = vmatpush1.xpose.msra.mxu0 0.0
        %2173 = vmatprep.subr.mxu0 0.0
        %2174 = vmatpush1.xpose.msra.mxu0 0.0
        %2175 = vmatprep.subr.mxu0 0.0
        %2176 = vmatpush1.xpose.msra.mxu0 0.0
        %2177 = vmatprep.subr.mxu0 0.0
        %2178 = vmatpush1.xpose.msra.mxu0 0.0
        %2179 = vmatprep.subr.mxu0 0.0
        %2180 = vmatpush1.xpose.msra.mxu0 0.0
        %2181 = vmatprep.subr.mxu0 0.0
        %2182 = vmatpush1.xpose.msra.mxu0 0.0
        %2183 = vmatprep.subr.mxu0 0.0
        %2184 = vmatpush1.xpose.msra.mxu0 0.0
        %2185 = vmatprep.mubr.f32.mxu0 0.0
        %2186 = vmatmul.mubr.f32.gmra.mrb[0].mxu0 %v1735
        %v2187 = vpop.f32.mrb[0].mxu0
        %v2188 = vadd.f32 0.0, %v2187
        %v2189 = vpop.f32.mrb[0].mxu0
        %2190 = vdwg.mxu0
        %2191 = vst [vmem:[#allocation5 + $0x10] sm:$0xff] %v2188
        %v2192 = vld [vmem:[#allocation2 + $0x18] sm:$0xff]
        %v2193 = vld [vmem:[#allocation3 + $0x18] sm:$0xff]
        %v2194 = vld [vmem:[#allocation4 + $0x18] sm:$0xff]
        %2195 = vxpose.xlu0.b32.start [1/16] %v2192, 128
        %2196 = vxpose.xlu0.b32.cont [2/16] 0.0, 128
        %2197 = vxpose.xlu0.b32.cont [3/16] 0.0, 128
        %2198 = vxpose.xlu0.b32.cont [4/16] 0.0, 128
        %2199 = vxpose.xlu0.b32.cont [5/16] 0.0, 128
        %2200 = vxpose.xlu0.b32.cont [6/16] 0.0, 128
        %2201 = vxpose.xlu0.b32.cont [7/16] 0.0, 128
        %2202 = vxpose.xlu0.b32.cont [8/16] 0.0, 128
        %2203 = vxpose.xlu0.b32.cont [9/16] 0.0, 128
        %2204 = vxpose.xlu0.b32.cont [10/16] 0.0, 128
        %2205 = vxpose.xlu0.b32.cont [11/16] 0.0, 128
        %2206 = vxpose.xlu0.b32.cont [12/16] 0.0, 128
        %2207 = vxpose.xlu0.b32.cont [13/16] 0.0, 128
        %2208 = vxpose.xlu0.b32.cont [14/16] 0.0, 128
        %2209 = vxpose.xlu0.b32.cont [15/16] 0.0, 128
        %2210 = vxpose.xlu0.b32.end [16/16] 0.0, 128
        %v2211 = vpop.trf.xlu0
        %v2212 = vpop.trf.xlu0
        %v2213 = vpop.trf.xlu0
        %v2214 = vpop.trf.xlu0
        %v2215 = vpop.trf.xlu0
        %v2216 = vpop.trf.xlu0
        %v2217 = vpop.trf.xlu0
        %v2218 = vpop.trf.xlu0
        %v2219 = vpop.trf.xlu0
        %v2220 = vpop.trf.xlu0
        %v2221 = vpop.trf.xlu0
        %v2222 = vpop.trf.xlu0
        %v2223 = vpop.trf.xlu0
        %v2224 = vpop.trf.xlu0
        %v2225 = vpop.trf.xlu0
        %v2226 = vpop.trf.xlu0
        %v2228 = vsel %vm849, %v2211, 0
        %v2231 = vsel %vm849, %v2212, 0
        %v2234 = vsel %vm849, %v2213, 0
        %v2237 = vsel %vm849, %v2214, 0
        %v2240 = vsel %vm849, %v2215, 0
        %v2243 = vsel %vm849, %v2216, 0
        %v2246 = vsel %vm849, %v2217, 0
        %v2249 = vsel %vm849, %v2218, 0
        %v2252 = vsel %vm849, %v2219, 0
        %v2255 = vsel %vm849, %v2220, 0
        %v2258 = vsel %vm849, %v2221, 0
        %v2261 = vsel %vm849, %v2222, 0
        %v2264 = vsel %vm849, %v2223, 0
        %v2267 = vsel %vm849, %v2224, 0
        %v2270 = vsel %vm849, %v2225, 0
        %v2273 = vsel %vm849, %v2226, 0
        %2275 = vmatprep.subr.mxu0 0.0
        %2276 = vmatpush1.msra.mxu0 %v2193
        %2277 = vmatprep.subr.mxu0 0.0
        %2278 = vmatpush1.msra.mxu0 0.0
        %2279 = vmatprep.subr.mxu0 0.0
        %2280 = vmatpush1.msra.mxu0 0.0
        %2281 = vmatprep.subr.mxu0 0.0
        %2282 = vmatpush1.msra.mxu0 0.0
        %2283 = vmatprep.subr.mxu0 0.0
        %2284 = vmatpush1.msra.mxu0 0.0
        %2285 = vmatprep.subr.mxu0 0.0
        %2286 = vmatpush1.msra.mxu0 0.0
        %2287 = vmatprep.subr.mxu0 0.0
        %2288 = vmatpush1.msra.mxu0 0.0
        %2289 = vmatprep.subr.mxu0 0.0
        %2290 = vmatpush1.msra.mxu0 0.0
        %2291 = vmatprep.subr.mxu0 0.0
        %2292 = vmatpush1.msra.mxu0 0.0
        %2293 = vmatprep.subr.mxu0 0.0
        %2294 = vmatpush1.msra.mxu0 0.0
        %2295 = vmatprep.subr.mxu0 0.0
        %2296 = vmatpush1.msra.mxu0 0.0
        %2297 = vmatprep.subr.mxu0 0.0
        %2298 = vmatpush1.msra.mxu0 0.0
        %2299 = vmatprep.subr.mxu0 0.0
        %2300 = vmatpush1.msra.mxu0 0.0
        %2301 = vmatprep.subr.mxu0 0.0
        %2302 = vmatpush1.msra.mxu0 0.0
        %2303 = vmatprep.subr.mxu0 0.0
        %2304 = vmatpush1.msra.mxu0 0.0
        %2305 = vmatprep.subr.mxu0 0.0
        %2306 = vmatpush1.msra.mxu0 0.0
        %2307 = vmatprep.subr.mxu0 0.0
        %2308 = vmatpush1.msra.mxu0 0.0
        %2309 = vmatprep.subr.mxu0 0.0
        %2310 = vmatpush1.msra.mxu0 0.0
        %2311 = vmatprep.subr.mxu0 0.0
        %2312 = vmatpush1.msra.mxu0 0.0
        %2313 = vmatprep.subr.mxu0 0.0
        %2314 = vmatpush1.msra.mxu0 0.0
        %2315 = vmatprep.subr.mxu0 0.0
        %2316 = vmatpush1.msra.mxu0 0.0
        %2317 = vmatprep.subr.mxu0 0.0
        %2318 = vmatpush1.msra.mxu0 0.0
        %2319 = vmatprep.subr.mxu0 0.0
        %2320 = vmatpush1.msra.mxu0 0.0
        %2321 = vmatprep.subr.mxu0 0.0
        %2322 = vmatpush1.msra.mxu0 0.0
        %2323 = vmatprep.subr.mxu0 0.0
        %2324 = vmatpush1.msra.mxu0 0.0
        %2325 = vmatprep.subr.mxu0 0.0
        %2326 = vmatpush1.msra.mxu0 0.0
        %2327 = vmatprep.subr.mxu0 0.0
        %2328 = vmatpush1.msra.mxu0 0.0
        %2329 = vmatprep.subr.mxu0 0.0
        %2330 = vmatpush1.msra.mxu0 0.0
        %2331 = vmatprep.subr.mxu0 0.0
        %2332 = vmatpush1.msra.mxu0 0.0
        %2333 = vmatprep.subr.mxu0 0.0
        %2334 = vmatpush1.msra.mxu0 0.0
        %2335 = vmatprep.subr.mxu0 0.0
        %2336 = vmatpush1.msra.mxu0 0.0
        %2337 = vmatprep.subr.mxu0 0.0
        %2338 = vmatpush1.msra.mxu0 0.0
        %2339 = vmatprep.mubr.f32.mxu0 0.0
        %2340 = vmatmul.mubr.f32.gmra.mrb[0].mxu0 %v2228
        %v2341 = vpop.f32.mrb[0].mxu0
        %v2342 = vadd.f32 0.0, %v2341
        %v2343 = vpop.f32.mrb[0].mxu0
        %2344 = vmatprep.mubr.f32.mxu0 0.0
        %2345 = vmatmul.mubr.f32.gmra.mrb[0].mxu0 %v2231
        %v2346 = vpop.f32.mrb[0].mxu0
        %v2347 = vadd.f32 0.0, %v2346
        %v2348 = vpop.f32.mrb[0].mxu0
        %2349 = vmatprep.mubr.f32.mxu0 0.0
        %2350 = vmatmul.mubr.f32.gmra.mrb[0].mxu0 %v2234
        %v2351 = vpop.f32.mrb[0].mxu0
        %v2352 = vadd.f32 0.0, %v2351
        %v2353 = vpop.f32.mrb[0].mxu0
        %2354 = vmatprep.mubr.f32.mxu0 0.0
        %2355 = vmatmul.mubr.f32.gmra.mrb[0].mxu0 %v2237
        %v2356 = vpop.f32.mrb[0].mxu0
        %v2357 = vadd.f32 0.0, %v2356
        %v2358 = vpop.f32.mrb[0].mxu0
        %2359 = vmatprep.mubr.f32.mxu0 0.0
        %2360 = vmatmul.mubr.f32.gmra.mrb[0].mxu0 %v2240
        %v2361 = vpop.f32.mrb[0].mxu0
        %v2362 = vadd.f32 0.0, %v2361
        %v2363 = vpop.f32.mrb[0].mxu0
        %2364 = vmatprep.mubr.f32.mxu0 0.0
        %2365 = vmatmul.mubr.f32.gmra.mrb[0].mxu0 %v2243
        %v2366 = vpop.f32.mrb[0].mxu0
        %v2367 = vadd.f32 0.0, %v2366
        %v2368 = vpop.f32.mrb[0].mxu0
        %2369 = vmatprep.mubr.f32.mxu0 0.0
        %2370 = vmatmul.mubr.f32.gmra.mrb[0].mxu0 %v2246
        %v2371 = vpop.f32.mrb[0].mxu0
        %v2372 = vadd.f32 0.0, %v2371
        %v2373 = vpop.f32.mrb[0].mxu0
        %2374 = vmatprep.mubr.f32.mxu0 0.0
        %2375 = vmatmul.mubr.f32.gmra.mrb[0].mxu0 %v2249
        %v2376 = vpop.f32.mrb[0].mxu0
        %v2377 = vadd.f32 0.0, %v2376
        %v2378 = vpop.f32.mrb[0].mxu0
        %2379 = vmatprep.mubr.f32.mxu0 0.0
        %2380 = vmatmul.mubr.f32.gmra.mrb[0].mxu0 %v2252
        %v2381 = vpop.f32.mrb[0].mxu0
        %v2382 = vadd.f32 0.0, %v2381
        %v2383 = vpop.f32.mrb[0].mxu0
        %2384 = vmatprep.mubr.f32.mxu0 0.0
        %2385 = vmatmul.mubr.f32.gmra.mrb[0].mxu0 %v2255
        %v2386 = vpop.f32.mrb[0].mxu0
        %v2387 = vadd.f32 0.0, %v2386
        %v2388 = vpop.f32.mrb[0].mxu0
        %2389 = vmatprep.mubr.f32.mxu0 0.0
        %2390 = vmatmul.mubr.f32.gmra.mrb[0].mxu0 %v2258
        %v2391 = vpop.f32.mrb[0].mxu0
        %v2392 = vadd.f32 0.0, %v2391
        %v2393 = vpop.f32.mrb[0].mxu0
        %2394 = vmatprep.mubr.f32.mxu0 0.0
        %2395 = vmatmul.mubr.f32.gmra.mrb[0].mxu0 %v2261
        %v2396 = vpop.f32.mrb[0].mxu0
        %v2397 = vadd.f32 0.0, %v2396
        %v2398 = vpop.f32.mrb[0].mxu0
        %2399 = vmatprep.mubr.f32.mxu0 0.0
        %2400 = vmatmul.mubr.f32.gmra.mrb[0].mxu0 %v2264
        %v2401 = vpop.f32.mrb[0].mxu0
        %v2402 = vadd.f32 0.0, %v2401
        %v2403 = vpop.f32.mrb[0].mxu0
        %2404 = vmatprep.mubr.f32.mxu0 0.0
        %2405 = vmatmul.mubr.f32.gmra.mrb[0].mxu0 %v2267
        %v2406 = vpop.f32.mrb[0].mxu0
        %v2407 = vadd.f32 0.0, %v2406
        %v2408 = vpop.f32.mrb[0].mxu0
        %2409 = vmatprep.mubr.f32.mxu0 0.0
        %2410 = vmatmul.mubr.f32.gmra.mrb[0].mxu0 %v2270
        %v2411 = vpop.f32.mrb[0].mxu0
        %v2412 = vadd.f32 0.0, %v2411
        %v2413 = vpop.f32.mrb[0].mxu0
        %2414 = vmatprep.mubr.f32.mxu0 0.0
        %2415 = vmatmul.mubr.f32.gmra.mrb[0].mxu0 %v2273
        %v2416 = vpop.f32.mrb[0].mxu0
        %v2417 = vadd.f32 0.0, %v2416
        %v2418 = vpop.f32.mrb[0].mxu0
        %2419 = vdwg.mxu0
        %v2420 = vsel %vm813, %v2342, -1e+30
        %v2421 = vsel %vm813, %v2347, -1e+30
        %v2422 = vsel %vm813, %v2352, -1e+30
        %v2423 = vsel %vm813, %v2357, -1e+30
        %v2424 = vsel %vm813, %v2362, -1e+30
        %v2425 = vsel %vm813, %v2367, -1e+30
        %v2426 = vsel %vm813, %v2372, -1e+30
        %v2427 = vsel %vm813, %v2377, -1e+30
        %v2428 = vsel %vm813, %v2382, -1e+30
        %v2429 = vsel %vm813, %v2387, -1e+30
        %v2430 = vsel %vm813, %v2392, -1e+30
        %v2431 = vsel %vm813, %v2397, -1e+30
        %v2432 = vsel %vm813, %v2402, -1e+30
        %v2433 = vsel %vm813, %v2407, -1e+30
        %v2434 = vsel %vm813, %v2412, -1e+30
        %v2435 = vsel %vm813, %v2417, -1e+30
        %2436 = vmax.xlane.f32.xlu0 %v2420
        %v2437 = vpop.xlane.xlu0 %2436
        %2438 = vmax.xlane.f32.xlu0 %v2421
        %v2439 = vpop.xlane.xlu0 %2438
        %2440 = vmax.xlane.f32.xlu0 %v2422
        %v2441 = vpop.xlane.xlu0 %2440
        %2442 = vmax.xlane.f32.xlu0 %v2423
        %v2443 = vpop.xlane.xlu0 %2442
        %2444 = vmax.xlane.f32.xlu0 %v2424
        %v2445 = vpop.xlane.xlu0 %2444
        %2446 = vmax.xlane.f32.xlu0 %v2425
        %v2447 = vpop.xlane.xlu0 %2446
        %2448 = vmax.xlane.f32.xlu0 %v2426
        %v2449 = vpop.xlane.xlu0 %2448
        %2450 = vmax.xlane.f32.xlu0 %v2427
        %v2451 = vpop.xlane.xlu0 %2450
        %2452 = vmax.xlane.f32.xlu0 %v2428
        %v2453 = vpop.xlane.xlu0 %2452
        %2454 = vmax.xlane.f32.xlu0 %v2429
        %v2455 = vpop.xlane.xlu0 %2454
        %2456 = vmax.xlane.f32.xlu0 %v2430
        %v2457 = vpop.xlane.xlu0 %2456
        %2458 = vmax.xlane.f32.xlu0 %v2431
        %v2459 = vpop.xlane.xlu0 %2458
        %2460 = vmax.xlane.f32.xlu0 %v2432
        %v2461 = vpop.xlane.xlu0 %2460
        %2462 = vmax.xlane.f32.xlu0 %v2433
        %v2463 = vpop.xlane.xlu0 %2462
        %2464 = vmax.xlane.f32.xlu0 %v2434
        %v2465 = vpop.xlane.xlu0 %2464
        %2466 = vmax.xlane.f32.xlu0 %v2435
        %v2467 = vpop.xlane.xlu0 %2466
        %v2468 = vsub.f32 %v2420, %v2437
        %v2469 = vsub.f32 %v2421, %v2439
        %v2470 = vsub.f32 %v2422, %v2441
        %v2471 = vsub.f32 %v2423, %v2443
        %v2472 = vsub.f32 %v2424, %v2445
        %v2473 = vsub.f32 %v2425, %v2447
        %v2474 = vsub.f32 %v2426, %v2449
        %v2475 = vsub.f32 %v2427, %v2451
        %v2476 = vsub.f32 %v2428, %v2453
        %v2477 = vsub.f32 %v2429, %v2455
        %v2478 = vsub.f32 %v2430, %v2457
        %v2479 = vsub.f32 %v2431, %v2459
        %v2480 = vsub.f32 %v2432, %v2461
        %v2481 = vsub.f32 %v2433, %v2463
        %v2482 = vsub.f32 %v2434, %v2465
        %v2483 = vsub.f32 %v2435, %v2467
        %v2484 = vmul.f32 %v2468, 1.442695
        %v2485 = vpow.pop %v2484
        %v2486 = vmul.f32 %v2469, 1.442695
        %v2487 = vpow.pop %v2486
        %v2488 = vmul.f32 %v2470, 1.442695
        %v2489 = vpow.pop %v2488
        %v2490 = vmul.f32 %v2471, 1.442695
        %v2491 = vpow.pop %v2490
        %v2492 = vmul.f32 %v2472, 1.442695
        %v2493 = vpow.pop %v2492
        %v2494 = vmul.f32 %v2473, 1.442695
        %v2495 = vpow.pop %v2494
        %v2496 = vmul.f32 %v2474, 1.442695
        %v2497 = vpow.pop %v2496
        %v2498 = vmul.f32 %v2475, 1.442695
        %v2499 = vpow.pop %v2498
        %v2500 = vmul.f32 %v2476, 1.442695
        %v2501 = vpow.pop %v2500
        %v2502 = vmul.f32 %v2477, 1.442695
        %v2503 = vpow.pop %v2502
        %v2504 = vmul.f32 %v2478, 1.442695
        %v2505 = vpow.pop %v2504
        %v2506 = vmul.f32 %v2479, 1.442695
        %v2507 = vpow.pop %v2506
        %v2508 = vmul.f32 %v2480, 1.442695
        %v2509 = vpow.pop %v2508
        %v2510 = vmul.f32 %v2481, 1.442695
        %v2511 = vpow.pop %v2510
        %v2512 = vmul.f32 %v2482, 1.442695
        %v2513 = vpow.pop %v2512
        %v2514 = vmul.f32 %v2483, 1.442695
        %v2515 = vpow.pop %v2514
        %2516 = vadd.xlane.f32.xlu0 %v2485
        %v2517 = vpop.xlane.xlu0 %2516
        %2518 = vadd.xlane.f32.xlu0 %v2487
        %v2519 = vpop.xlane.xlu0 %2518
        %2520 = vadd.xlane.f32.xlu0 %v2489
        %v2521 = vpop.xlane.xlu0 %2520
        %2522 = vadd.xlane.f32.xlu0 %v2491
        %v2523 = vpop.xlane.xlu0 %2522
        %2524 = vadd.xlane.f32.xlu0 %v2493
        %v2525 = vpop.xlane.xlu0 %2524
        %2526 = vadd.xlane.f32.xlu0 %v2495
        %v2527 = vpop.xlane.xlu0 %2526
        %2528 = vadd.xlane.f32.xlu0 %v2497
        %v2529 = vpop.xlane.xlu0 %2528
        %2530 = vadd.xlane.f32.xlu0 %v2499
        %v2531 = vpop.xlane.xlu0 %2530
        %2532 = vadd.xlane.f32.xlu0 %v2501
        %v2533 = vpop.xlane.xlu0 %2532
        %2534 = vadd.xlane.f32.xlu0 %v2503
        %v2535 = vpop.xlane.xlu0 %2534
        %2536 = vadd.xlane.f32.xlu0 %v2505
        %v2537 = vpop.xlane.xlu0 %2536
        %2538 = vadd.xlane.f32.xlu0 %v2507
        %v2539 = vpop.xlane.xlu0 %2538
        %2540 = vadd.xlane.f32.xlu0 %v2509
        %v2541 = vpop.xlane.xlu0 %2540
        %2542 = vadd.xlane.f32.xlu0 %v2511
        %v2543 = vpop.xlane.xlu0 %2542
        %2544 = vadd.xlane.f32.xlu0 %v2513
        %v2545 = vpop.xlane.xlu0 %2544
        %2546 = vadd.xlane.f32.xlu0 %v2515
        %v2547 = vpop.xlane.xlu0 %2546
        %v2548 = vrcp.pop %v2517
        %v2549 = vrcp.pop %v2519
        %v2550 = vrcp.pop %v2521
        %v2551 = vrcp.pop %v2523
        %v2552 = vrcp.pop %v2525
        %v2553 = vrcp.pop %v2527
        %v2554 = vrcp.pop %v2529
        %v2555 = vrcp.pop %v2531
        %v2556 = vrcp.pop %v2533
        %v2557 = vrcp.pop %v2535
        %v2558 = vrcp.pop %v2537
        %v2559 = vrcp.pop %v2539
        %v2560 = vrcp.pop %v2541
        %v2561 = vrcp.pop %v2543
        %v2562 = vrcp.pop %v2545
        %v2563 = vrcp.pop %v2547
        %v2564 = vmul.f32 %v2485, %v2548
        %v2565 = vmul.f32 %v2487, %v2549
        %v2566 = vmul.f32 %v2489, %v2550
        %v2567 = vmul.f32 %v2491, %v2551
        %v2568 = vmul.f32 %v2493, %v2552
        %v2569 = vmul.f32 %v2495, %v2553
        %v2570 = vmul.f32 %v2497, %v2554
        %v2571 = vmul.f32 %v2499, %v2555
        %v2572 = vmul.f32 %v2501, %v2556
        %v2573 = vmul.f32 %v2503, %v2557
        %v2574 = vmul.f32 %v2505, %v2558
        %v2575 = vmul.f32 %v2507, %v2559
        %v2576 = vmul.f32 %v2509, %v2560
        %v2577 = vmul.f32 %v2511, %v2561
        %v2578 = vmul.f32 %v2513, %v2562
        %v2579 = vmul.f32 %v2515, %v2563
        %2580 = vmatprep.subr.mxu0 0.0
        %2581 = vmatpush1.xpose.msra.mxu0 %v2564
        %2582 = vmatprep.subr.mxu0 0.0
        %2583 = vmatpush1.xpose.msra.mxu0 %v2565
        %2584 = vmatprep.subr.mxu0 0.0
        %2585 = vmatpush1.xpose.msra.mxu0 %v2566
        %2586 = vmatprep.subr.mxu0 0.0
        %2587 = vmatpush1.xpose.msra.mxu0 %v2567
        %2588 = vmatprep.subr.mxu0 0.0
        %2589 = vmatpush1.xpose.msra.mxu0 %v2568
        %2590 = vmatprep.subr.mxu0 0.0
        %2591 = vmatpush1.xpose.msra.mxu0 %v2569
        %2592 = vmatprep.subr.mxu0 0.0
        %2593 = vmatpush1.xpose.msra.mxu0 %v2570
        %2594 = vmatprep.subr.mxu0 0.0
        %2595 = vmatpush1.xpose.msra.mxu0 %v2571
        %2596 = vmatprep.subr.mxu0 0.0
        %2597 = vmatpush1.xpose.msra.mxu0 %v2572
        %2598 = vmatprep.subr.mxu0 0.0
        %2599 = vmatpush1.xpose.msra.mxu0 %v2573
        %2600 = vmatprep.subr.mxu0 0.0
        %2601 = vmatpush1.xpose.msra.mxu0 %v2574
        %2602 = vmatprep.subr.mxu0 0.0
        %2603 = vmatpush1.xpose.msra.mxu0 %v2575
        %2604 = vmatprep.subr.mxu0 0.0
        %2605 = vmatpush1.xpose.msra.mxu0 %v2576
        %2606 = vmatprep.subr.mxu0 0.0
        %2607 = vmatpush1.xpose.msra.mxu0 %v2577
        %2608 = vmatprep.subr.mxu0 0.0
        %2609 = vmatpush1.xpose.msra.mxu0 %v2578
        %2610 = vmatprep.subr.mxu0 0.0
        %2611 = vmatpush1.xpose.msra.mxu0 %v2579
        %2612 = vmatprep.subr.mxu0 0.0
        %2613 = vmatpush1.xpose.msra.mxu0 0.0
        %2614 = vmatprep.subr.mxu0 0.0
        %2615 = vmatpush1.xpose.msra.mxu0 0.0
        %2616 = vmatprep.subr.mxu0 0.0
        %2617 = vmatpush1.xpose.msra.mxu0 0.0
        %2618 = vmatprep.subr.mxu0 0.0
        %2619 = vmatpush1.xpose.msra.mxu0 0.0
        %2620 = vmatprep.subr.mxu0 0.0
        %2621 = vmatpush1.xpose.msra.mxu0 0.0
        %2622 = vmatprep.subr.mxu0 0.0
        %2623 = vmatpush1.xpose.msra.mxu0 0.0
        %2624 = vmatprep.subr.mxu0 0.0
        %2625 = vmatpush1.xpose.msra.mxu0 0.0
        %2626 = vmatprep.subr.mxu0 0.0
        %2627 = vmatpush1.xpose.msra.mxu0 0.0
        %2628 = vmatprep.subr.mxu0 0.0
        %2629 = vmatpush1.xpose.msra.mxu0 0.0
        %2630 = vmatprep.subr.mxu0 0.0
        %2631 = vmatpush1.xpose.msra.mxu0 0.0
        %2632 = vmatprep.subr.mxu0 0.0
        %2633 = vmatpush1.xpose.msra.mxu0 0.0
        %2634 = vmatprep.subr.mxu0 0.0
        %2635 = vmatpush1.xpose.msra.mxu0 0.0
        %2636 = vmatprep.subr.mxu0 0.0
        %2637 = vmatpush1.xpose.msra.mxu0 0.0
        %2638 = vmatprep.subr.mxu0 0.0
        %2639 = vmatpush1.xpose.msra.mxu0 0.0
        %2640 = vmatprep.subr.mxu0 0.0
        %2641 = vmatpush1.xpose.msra.mxu0 0.0
        %2642 = vmatprep.subr.mxu0 0.0
        %2643 = vmatpush1.xpose.msra.mxu0 0.0
        %2644 = vmatprep.mubr.f32.mxu0 0.0
        %2645 = vmatmul.mubr.f32.gmra.mrb[0].mxu0 %v2194
        %v2646 = vpop.f32.mrb[0].mxu0
        %v2647 = vadd.f32 0.0, %v2646
        %v2648 = vpop.f32.mrb[0].mxu0
        %2649 = vdwg.mxu0
        %2650 = vst [vmem:[#allocation5 + $0x18] sm:$0xff] %v2647
        %v2651 = vld [vmem:[#allocation6] sm:$0xf]
        %v2652 = vld [vmem:[#allocation6 + $0x4] sm:$0xf]
        %v2653 = vld [vmem:[#allocation6 + $0x8] sm:$0xf]
        %v2654 = vld [vmem:[#allocation6 + $0xc] sm:$0xf]
        %v2655 = vld [vmem:[#allocation5] sm:$0xff]
        %v2656 = vld [vmem:[#allocation5 + $0x8] sm:$0xff]
        %v2657 = vld [vmem:[#allocation5 + $0x10] sm:$0xff]
        %v2658 = vld [vmem:[#allocation5 + $0x18] sm:$0xff]
        %v2659 = vld [vmem:[%s10] sm:$0xff]
        %v2660 = vld [vmem:[%s10 + $0x8] sm:$0xff]
        %v2661 = vld [vmem:[%s10 + $0x10] sm:$0xff]
        %v2662 = vld [vmem:[%s10 + $0x18] sm:$0xff]
        %2664 = vset.pattern.permute.xlu0 0
        %2665 = vperm.xlu0 %2664, %v2659
        %v2666 = vpop.permute.xlu0 %2665
        %2669 = vset.pattern.permute.xlu0 0
        %2670 = vperm.xlu0 %2669, %v2660
        %v2671 = vpop.permute.xlu0 %2670
        %2674 = vset.pattern.permute.xlu0 0
        %2675 = vperm.xlu0 %2674, %v2661
        %v2676 = vpop.permute.xlu0 %2675
        %2679 = vset.pattern.permute.xlu0 0
        %2680 = vperm.xlu0 %2679, %v2662
        %v2681 = vpop.permute.xlu0 %2680
        %v2687 = vunpack.c.l.b16 %v2651
        %v2688 = vunpack.c.l.b16 %v2652
        %v2689 = vunpack.c.l.b16 %v2653
        %v2690 = vunpack.c.l.b16 %v2654
        %v2691 = vpack.c.b16 %v2688, %v2687
        %v2692 = vpack.c.b16 %v2690, %v2689
        %v2694 = vsel %vm751, %v2691, 0
        %v2697 = vsel %vm751, %v2692, 0
        %2699 = vmatprep.subr.mxu0 0.0
        %2700 = vmatpush1.msra.mxu0 %v2655
        %2701 = vmatprep.subr.mxu0 0.0
        %2702 = vmatpush1.msra.mxu0 %v2656
        %2703 = vmatprep.subr.mxu0 0.0
        %2704 = vmatpush1.msra.mxu0 %v2657
        %2705 = vmatprep.subr.mxu0 0.0
        %2706 = vmatpush1.msra.mxu0 %v2658
        %2707 = vmatprep.subr.mxu0 0.0
        %2708 = vmatpush1.msra.mxu0 0.0
        %2709 = vmatprep.subr.mxu0 0.0
        %2710 = vmatpush1.msra.mxu0 0.0
        %2711 = vmatprep.subr.mxu0 0.0
        %2712 = vmatpush1.msra.mxu0 0.0
        %2713 = vmatprep.subr.mxu0 0.0
        %2714 = vmatpush1.msra.mxu0 0.0
        %2715 = vmatprep.subr.mxu0 0.0
        %2716 = vmatpush1.msra.mxu0 0.0
        %2717 = vmatprep.subr.mxu0 0.0
        %2718 = vmatpush1.msra.mxu0 0.0
        %2719 = vmatprep.subr.mxu0 0.0
        %2720 = vmatpush1.msra.mxu0 0.0
        %2721 = vmatprep.subr.mxu0 0.0
        %2722 = vmatpush1.msra.mxu0 0.0
        %2723 = vmatprep.subr.mxu0 0.0
        %2724 = vmatpush1.msra.mxu0 0.0
        %2725 = vmatprep.subr.mxu0 0.0
        %2726 = vmatpush1.msra.mxu0 0.0
        %2727 = vmatprep.subr.mxu0 0.0
        %2728 = vmatpush1.msra.mxu0 0.0
        %2729 = vmatprep.subr.mxu0 0.0
        %2730 = vmatpush1.msra.mxu0 0.0
        %2731 = vmatprep.subr.mxu0 0.0
        %2732 = vmatpush1.msra.mxu0 0.0
        %2733 = vmatprep.subr.mxu0 0.0
        %2734 = vmatpush1.msra.mxu0 0.0
        %2735 = vmatprep.subr.mxu0 0.0
        %2736 = vmatpush1.msra.mxu0 0.0
        %2737 = vmatprep.subr.mxu0 0.0
        %2738 = vmatpush1.msra.mxu0 0.0
        %2739 = vmatprep.subr.mxu0 0.0
        %2740 = vmatpush1.msra.mxu0 0.0
        %2741 = vmatprep.subr.mxu0 0.0
        %2742 = vmatpush1.msra.mxu0 0.0
        %2743 = vmatprep.subr.mxu0 0.0
        %2744 = vmatpush1.msra.mxu0 0.0
        %2745 = vmatprep.subr.mxu0 0.0
        %2746 = vmatpush1.msra.mxu0 0.0
        %2747 = vmatprep.subr.mxu0 0.0
        %2748 = vmatpush1.msra.mxu0 0.0
        %2749 = vmatprep.subr.mxu0 0.0
        %2750 = vmatpush1.msra.mxu0 0.0
        %2751 = vmatprep.subr.mxu0 0.0
        %2752 = vmatpush1.msra.mxu0 0.0
        %2753 = vmatprep.subr.mxu0 0.0
        %2754 = vmatpush1.msra.mxu0 0.0
        %2755 = vmatprep.subr.mxu0 0.0
        %2756 = vmatpush1.msra.mxu0 0.0
        %2757 = vmatprep.subr.mxu0 0.0
        %2758 = vmatpush1.msra.mxu0 0.0
        %2759 = vmatprep.subr.mxu0 0.0
        %2760 = vmatpush1.msra.mxu0 0.0
        %2761 = vmatprep.subr.mxu0 0.0
        %2762 = vmatpush1.msra.mxu0 0.0
        %2763 = vmatprep.mubr.bf16.mxu0 0
        %2764 = vmatmul.mubr.bf16.gmra.mrb[0].mxu0 %v2694
        %v2765 = vpop.f32.mrb[0].mxu0
        %v2766 = vadd.f32 %v2666, %v2765
        %v2767 = vpop.f32.mrb[0].mxu0
        %v2768 = vpop.f32.mrb[0].mxu0
        %v2769 = vadd.f32 %v2671, %v2768
        %v2770 = vpop.f32.mrb[0].mxu0
        %2771 = vmatprep.mubr.bf16.mxu0 0
        %2772 = vmatmul.mubr.bf16.gmra.mrb[0].mxu0 %v2697
        %v2773 = vpop.f32.mrb[0].mxu0
        %v2774 = vadd.f32 %v2676, %v2773
        %v2775 = vpop.f32.mrb[0].mxu0
        %v2776 = vpop.f32.mrb[0].mxu0
        %v2777 = vadd.f32 %v2681, %v2776
        %v2778 = vpop.f32.mrb[0].mxu0
        %2779 = vdwg.mxu0
        %2780 = vst [vmem:[%s446] sm:$0xff] %v2766
        %2781 = vst [vmem:[%s446 + $0x8] sm:$0xff] %v2769
        %2782 = vst [vmem:[%s446 + $0x10] sm:$0xff] %v2774
        %2783 = vst [vmem:[%s446 + $0x18] sm:$0xff] %v2777
        %s2784 = sand.u32 %s296, 1
        %s2785 = scalar_lea.sflag [#allocation8], %s2784
        %s2786 = sand.u32 %s296, 1
        %s2787 = smul.addr %s2786, 32
        %s2788 = scalar_lea.vmem [#allocation9], %s2787
        // Predicated region
        $region73: #{tpu_custom_call.1} parent=63 // pred_check
          %p2789 = pneg %p306
        $region74: #{tpu_custom_call.1} parent=63 // pred_check_branch
          %2791 = sbr.rel (%p2789) target = $region76
        $region75: #{tpu_custom_call.1} parent=63 // pred_region
          %s2793 = ssub.s32 512, 512
          %2794 = vsyncadd %s2785, %s2793
          %s2795 = smul.addr %s30, 4
          %s2796 = sadd.s32 %s31, %s2795
          %s2797 = smul.addr %s2796, 128
          %s2798 = scalar_lea.hbm %s11, %s2797
          %s2799 = sshll.u32 %s2788, 4
          %s2800 = int_to_ptr.vmem [resolvable:$true] %s2799
          %2805 = dma.vmem_to_hbm [thread:$0]  %s2800, 512, %s2798, %s2785, 128, 128, 8
        $region76: #{tpu_custom_call.1} parent=63 // pred_fallthru
          _
      $region64: #{tpu_custom_call.1} parent=5 // pred_fallthru
        _
      %p2806 = scmp.le.s32.totalorder 2, %s21
      // Predicated region
      $region77: #{tpu_custom_call.1} parent=5 // pred_check
        %p2807 = pneg %p2806
      $region78: #{tpu_custom_call.1} parent=5 // pred_check_branch
        %2809 = sbr.rel (%p2807) target = $region80
      $region79: #{tpu_custom_call.1} parent=5 // pred_region
        %s2810 = ssub.s32 %s21, 2
        // Predicated region
        $region81: #{tpu_custom_call.1} parent=79 // pred_check
          %p2811 = pneg %p312
        $region82: #{tpu_custom_call.1} parent=79 // pred_check_branch
          %2813 = sbr.rel (%p2811) target = $region84
        $region83: #{tpu_custom_call.1} parent=79 // pred_region
          %s2814 = sand.u32 %s297, 1
          %s2815 = scalar_lea.sflag [#allocation8], %s2814
          %s2816 = sand.u32 %s297, 1
          %s2817 = smul.addr %s2816, 32
          %s2818 = scalar_lea.vmem [#allocation9], %s2817
          %2819 = dma.done %s2815, 512
        $region84: #{tpu_custom_call.1} parent=79 // pred_fallthru
          _
      $region80: #{tpu_custom_call.1} parent=5 // pred_fallthru
        _
    $region6: #{tpu_custom_call.1} parent=1 // loop_footer
      %s25 = sadd.s32 1, %s21
    $region7: #{tpu_custom_call.1} parent=1 // loop_footer_branch
      %20 = sbr.rel target = $region3
    $region8: #{tpu_custom_call.1} parent=1 // loop_exit
      _
    %2820 = vsyncpa [#allocation7], 1
    %s2821 = scalar_lea.sflag [#allocation7], 1
    %2822 = vsyncpa %s2821, 1
    %2823 = vsyncpa [#allocation8], 1
    %s2824 = scalar_lea.sflag [#allocation8], 1
    %2825 = vsyncpa %s2824, 1

</llo_original>
